<compile_context>
chip_gen: v6e
topology: v6e:2x2x1
jax: 0.10.0
libtpu: 0.0.40
codegen_flags: <defaults>
</compile_context>

<pallas_src>
import jax
import jax.numpy as jnp
import numpy as np
from jax.experimental import pallas as pl
from jax.experimental.pallas import tpu as pltpu

# ----------------------------- problem sizes --------------------------------
NUM_INNER_ITERATIONS = 8     # curriculum length (N)
GEN_BATCH = 8                # generator_batch_size (B)
NOISE_SIZE = 32              # noise_size
NUM_CLASSES = 10
IN_DIM = NOISE_SIZE + NUM_CLASSES   # 42  (concat of noise and one-hot label)
HIDDEN = 64                  # generator hidden width
IMG = 16                     # generated image is (1, IMG, IMG)
OUT_DIM = 1 * IMG * IMG      # 256

_HIGHEST = jax.lax.Precision.HIGHEST


# ------------------------------ Pallas kernel --------------------------------
def cgtn_generator_kernel(noise_ref,   # (N*B, NOISE_SIZE)
                          lab_ref,     # (N*B, NUM_CLASSES)
                          w1n_ref,     # (NOISE_SIZE, HIDDEN)
                          w1l_ref,     # (NUM_CLASSES, HIDDEN)
                          b1_ref,      # (1, HIDDEN)
                          w2_ref,      # (HIDDEN, OUT_DIM)
                          b2_ref,      # (1, OUT_DIM)
                          x_ref):      # out: (N*B, OUT_DIM)
    # Everything is VMEM-resident; no grid.  Split first-layer matmul avoids any
    # lane-dim concat.  ReLU on VPU, tanh on EUP, matmuls on MXU (f32, HIGHEST).
    h = (jnp.dot(noise_ref[...], w1n_ref[...],
                 precision=_HIGHEST, preferred_element_type=jnp.float32)
         + jnp.dot(lab_ref[...], w1l_ref[...],
                   precision=_HIGHEST, preferred_element_type=jnp.float32)
         + b1_ref[...])
    h = jnp.maximum(h, 0.0)                                  # ReLU
    x_ref[...] = jnp.tanh(
        jnp.dot(h, w2_ref[...],
                precision=_HIGHEST, preferred_element_type=jnp.float32)
        + b2_ref[...])


@jax.jit
def cgtn_generate_all(curriculum, labels_one_hot, w1n, w1l, b1, w2, b2):
    """Run the generator on every curriculum iteration in one pallas_call.

    Returns images for all iterations, shaped (N, B, 1, IMG, IMG).
    """
    N, B, noise_size = curriculum.shape
    rows = N * B
    # Contiguous reshapes are metadata-only (no HBM roundtrip, unlike a concat).
    noise_flat = curriculum.reshape(rows, noise_size)
    labels_flat = labels_one_hot.reshape(rows, NUM_CLASSES)

    vmem = pltpu.MemorySpace.VMEM
    bytes_accessed = 4 * (noise_flat.size + labels_flat.size + w1n.size
                          + w1l.size + b1.size + w2.size + b2.size
                          + rows * OUT_DIM)
    x_flat = pl.pallas_call(
        cgtn_generator_kernel,
        out_shape=jax.ShapeDtypeStruct((rows, OUT_DIM), jnp.float32),
        in_specs=[pl.BlockSpec(memory_space=vmem)] * 7,
        out_specs=pl.BlockSpec(memory_space=vmem),
        cost_estimate=pl.CostEstimate(
            flops=2 * rows * (IN_DIM * HIDDEN + HIDDEN * OUT_DIM),
            transcendentals=rows * OUT_DIM,
            bytes_accessed=bytes_accessed,
        ),
    )(noise_flat, labels_flat, w1n, w1l, b1, w2, b2)

    # NCHW per iteration, matching the PyTorch generator-output convention.
    return x_flat.reshape(N, B, 1, IMG, IMG)


def cgtn_forward(it, x_all, labels_one_hot):
    """CGTN.forward(it) -> (x NCHW, one-hot label).

    The label is pure indexing of the (non-generated) parameter; it never
    round-trips through the kernel.  x is a slice of the batched Pallas result.
    """
    return x_all[it], labels_one_hot[it]


# ------------------------- deterministic parameters --------------------------
def build_params():
    key = jax.random.PRNGKey(0)
    k_lab, k_cur, k_w1, k_b1, k_w2, k_b2 = jax.random.split(key, 6)

    # curriculum_labels ~ randint(10, (N, B)); one-hot scatter -> (N, B, 10)
    curriculum_labels = jax.random.randint(
        k_lab, (NUM_INNER_ITERATIONS, GEN_BATCH), 0, NUM_CLASSES, dtype=jnp.int32)
    labels_one_hot = jax.nn.one_hot(
        curriculum_labels, NUM_CLASSES, dtype=jnp.float32)

    # curriculum ~ randn(N, B, noise_size)
    curriculum = jax.random.normal(
        k_cur, (NUM_INNER_ITERATIONS, GEN_BATCH, NOISE_SIZE), dtype=jnp.float32)

    # generator (MLP) weights.  The first-layer weight is built as a single
    # (IN_DIM, HIDDEN) matrix and split ONCE here (host side, not per-forward),
    # so the kernel can do the split matmul without any wrapper concat/slice ops.
    # TODO(synk): the real generator architecture is supplied externally in
    # train_cgtn.py; this synthetic MLP stands in for the torch.jit.trace'd module.
    scale1 = 1.0 / np.sqrt(IN_DIM)
    scale2 = 1.0 / np.sqrt(HIDDEN)
    w1 = scale1 * jax.random.normal(k_w1, (IN_DIM, HIDDEN), dtype=jnp.float32)
    w1n = w1[:NOISE_SIZE, :]
    w1l = w1[NOISE_SIZE:, :]
    b1 = scale1 * jax.random.normal(k_b1, (1, HIDDEN), dtype=jnp.float32)
    w2 = scale2 * jax.random.normal(k_w2, (HIDDEN, OUT_DIM), dtype=jnp.float32)
    b2 = scale2 * jax.random.normal(k_b2, (1, OUT_DIM), dtype=jnp.float32)

    return curriculum, labels_one_hot, w1n, w1l, b1, w2, b2


# --------------------------------- reference ---------------------------------
def reference_forward(it, curriculum, labels_one_hot, w1n, w1l, b1, w2, b2):
    """Mirror of the PyTorch CGTN.forward for one iteration (pure JAX/XLA)."""
    lab = labels_one_hot[it]
    noise = curriculum[it]
    h = (jnp.dot(noise, w1n, precision=_HIGHEST)
         + jnp.dot(lab, w1l, precision=_HIGHEST)
         + b1)
    h = jnp.maximum(h, 0.0)
    x = jnp.tanh(jnp.dot(h, w2, precision=_HIGHEST) + b2)
    return x.reshape(GEN_BATCH, 1, IMG, IMG), lab


# ----------------------------------- main ------------------------------------
if __name__ == "__main__":
    (curriculum, labels_one_hot, w1n, w1l, b1, w2, b2) = build_params()

    # One Pallas launch amortized over all curriculum iterations.
    x_all = cgtn_generate_all(curriculum, labels_one_hot, w1n, w1l, b1, w2, b2)
    jax.block_until_ready(x_all)
    assert x_all.shape == (NUM_INNER_ITERATIONS, GEN_BATCH, 1, IMG, IMG)

    for it in range(NUM_INNER_ITERATIONS):
        x, label = cgtn_forward(it, x_all, labels_one_hot)
        x_ref, label_ref = reference_forward(
            it, curriculum, labels_one_hot, w1n, w1l, b1, w2, b2)
        assert x.shape == (GEN_BATCH, 1, IMG, IMG)
        assert label.shape == (GEN_BATCH, NUM_CLASSES)
        np.testing.assert_allclose(np.asarray(x), np.asarray(x_ref),
                                   rtol=1e-5, atol=1e-5)
        np.testing.assert_allclose(np.asarray(label), np.asarray(label_ref),
                                   rtol=0, atol=0)

    print("KERNEL_OK")
</pallas_src>

<mosaic_0001>
module attributes {stable_mosaic.version = 11 : i64} {
  func.func @cgtn_generator_kernel(%arg0: memref<64x32xf32, #tpu.memory_space<vmem>>, %arg1: memref<64x10xf32, #tpu.memory_space<vmem>>, %arg2: memref<32x64xf32, #tpu.memory_space<vmem>>, %arg3: memref<10x64xf32, #tpu.memory_space<vmem>>, %arg4: memref<1x64xf32, #tpu.memory_space<vmem>>, %arg5: memref<64x256xf32, #tpu.memory_space<vmem>>, %arg6: memref<1x256xf32, #tpu.memory_space<vmem>>, %arg7: memref<64x256xf32, #tpu.memory_space<vmem>>) attributes {dimension_semantics = [], scalar_prefetch = 0 : i64, scratch_operands = 0 : i64, tpu.core_type = #tpu.core_type<tc>} {
    %c0 = arith.constant 0 : index
    %c0_0 = arith.constant 0 : index
    %0 = vector.load %arg0[%c0, %c0_0] : memref<64x32xf32, #tpu.memory_space<vmem>>, vector<64x32xf32>
    %c0_1 = arith.constant 0 : index
    %c0_2 = arith.constant 0 : index
    %1 = vector.load %arg2[%c0_1, %c0_2] : memref<32x64xf32, #tpu.memory_space<vmem>>, vector<32x64xf32>
    %cst = arith.constant dense<0.000000e+00> : vector<64x64xf32>
    %2 = tpu.matmul %0, %1, %cst {dimension_numbers = #tpu.dot_dimension_numbers<[1], [0], [0], [1], [0, 0, 1, 1], [], []>, precision = #tpu.contract_precision<fp32>} : vector<64x32xf32>, vector<32x64xf32>, vector<64x64xf32> -> vector<64x64xf32>
    %c0_3 = arith.constant 0 : index
    %c0_4 = arith.constant 0 : index
    %3 = vector.load %arg1[%c0_3, %c0_4] : memref<64x10xf32, #tpu.memory_space<vmem>>, vector<64x10xf32>
    %c0_5 = arith.constant 0 : index
    %c0_6 = arith.constant 0 : index
    %4 = vector.load %arg3[%c0_5, %c0_6] : memref<10x64xf32, #tpu.memory_space<vmem>>, vector<10x64xf32>
    %cst_7 = arith.constant dense<0.000000e+00> : vector<64x64xf32>
    %5 = tpu.matmul %3, %4, %cst_7 {dimension_numbers = #tpu.dot_dimension_numbers<[1], [0], [0], [1], [0, 0, 1, 1], [], []>, precision = #tpu.contract_precision<fp32>} : vector<64x10xf32>, vector<10x64xf32>, vector<64x64xf32> -> vector<64x64xf32>
    %6 = arith.addf %2, %5 : vector<64x64xf32>
    %c0_8 = arith.constant 0 : index
    %c0_9 = arith.constant 0 : index
    %7 = vector.load %arg4[%c0_8, %c0_9] : memref<1x64xf32, #tpu.memory_space<vmem>>, vector<1x64xf32>
    %8 = vector.broadcast %7 : vector<1x64xf32> to vector<64x64xf32>
    %9 = arith.addf %6, %8 : vector<64x64xf32>
    %cst_10 = arith.constant 0.000000e+00 : f32
    %10 = vector.broadcast %cst_10 : f32 to vector<64x64xf32>
    %11 = arith.maximumf %9, %10 : vector<64x64xf32>
    %c0_11 = arith.constant 0 : index
    %c0_12 = arith.constant 0 : index
    %12 = vector.load %arg5[%c0_11, %c0_12] : memref<64x256xf32, #tpu.memory_space<vmem>>, vector<64x256xf32>
    %cst_13 = arith.constant dense<0.000000e+00> : vector<64x256xf32>
    %13 = tpu.matmul %11, %12, %cst_13 {dimension_numbers = #tpu.dot_dimension_numbers<[1], [0], [0], [1], [0, 0, 1, 1], [], []>, precision = #tpu.contract_precision<fp32>} : vector<64x64xf32>, vector<64x256xf32>, vector<64x256xf32> -> vector<64x256xf32>
    %c0_14 = arith.constant 0 : index
    %c0_15 = arith.constant 0 : index
    %14 = vector.load %arg6[%c0_14, %c0_15] : memref<1x256xf32, #tpu.memory_space<vmem>>, vector<1x256xf32>
    %15 = vector.broadcast %14 : vector<1x256xf32> to vector<64x256xf32>
    %16 = arith.addf %13, %15 : vector<64x256xf32>
    %17 = math.tanh %16 : vector<64x256xf32>
    %c0_16 = arith.constant 0 : index
    %c0_17 = arith.constant 0 : index
    %18 = vector.load %arg7[%c0_16, %c0_17] : memref<64x256xf32, #tpu.memory_space<vmem>>, vector<64x256xf32>
    tpu.vector_store %arg7[%c0_16, %c0_17], %17 {strides = array<i32>} : memref<64x256xf32, #tpu.memory_space<vmem>>, vector<64x256xf32>,
    return
  }
}

</mosaic_0001>

<llo_original>
// kernel: cgtn_generate_all.1
$region0: #{cgtn_generate_all.1}
  #allocation0 [shape = 'u32[]', space=smem, size = 0x4, offset = 0x4, fixed_abs, tag = 'smem constant byte address 0x4 - core index']
  #allocation1 [shape = 'u32[144,128]{1,0:T(1,128)}', space=vmem, size = 0x12000, scoped, tag = 'internal scratch']
  %s0 = inlined_call_operand.hbm [shape: f32[64,32], index: 0, kind: input, shape index: {}]
  %s1 = inlined_call_operand.hbm [shape: f32[64,10], index: 1, kind: input, shape index: {}]
  %s2 = inlined_call_operand.hbm [shape: f32[32,64], index: 2, kind: input, shape index: {}]
  %s3 = inlined_call_operand.hbm [shape: f32[10,64], index: 3, kind: input, shape index: {}]
  %s4 = inlined_call_operand.vmem [shape: f32[1,64], index: 4, kind: input, shape index: {}]
  %s5 = inlined_call_operand.hbm [shape: f32[64,256], index: 5, kind: input, shape index: {}]
  %s6 = inlined_call_operand.vmem [shape: f32[1,256], index: 6, kind: input, shape index: {}]
  %s7 = inlined_call_operand.vmem [shape: f32[64,256], index: 7, kind: output, shape index: {}]
  %s8 = sld [smem:[#allocation0]]
  $region58: #{cgtn_generate_all.1} parent=0
    _
  %s10 = ssub.s32 1, %s8
  %s11 = scalar_select 0, %s10, %s8
  $region1: #{cgtn_generate_all.1} parent=0
    #allocation2 [shape = 'u8[32768]{0}', space=vmem, size = 0x8000, scoped, tag = 'input window, operand 0, single buffered']
    #allocation3 [shape = 's32[1]{0}', space=sflag, size = 0x4, scoped, tag = 'scoped memory for cgtn_generate_all.1']
    #allocation4 [shape = 'u8[32768]{0}', space=vmem, size = 0x8000, scoped, tag = 'input window, operand 1, single buffered']
    #allocation5 [shape = 's32[1]{0}', space=sflag, size = 0x4, scoped, tag = 'scoped memory for cgtn_generate_all.1']
    #allocation6 [shape = 'u8[16384]{0}', space=vmem, size = 0x4000, scoped, tag = 'input window, operand 2, single buffered']
    #allocation7 [shape = 'u8[8192]{0}', space=vmem, size = 0x2000, scoped, tag = 'input window, operand 3, single buffered']
    #allocation8 [shape = 's32[1]{0}', space=sflag, size = 0x4, scoped, tag = 'scoped memory for cgtn_generate_all.1']
    #allocation9 [shape = 'u8[65536]{0}', space=vmem, size = 0x10000, scoped, tag = 'input window, operand 5, single buffered']
    %12 = vsyncpa [#allocation3], 0
    %13 = vsyncpa [#allocation5], 0
    %14 = vsyncpa [#allocation8], 0
    // Predicated region
    $region2: #{cgtn_generate_all.1} parent=1 // pred_check
      _
    $region3: #{cgtn_generate_all.1} parent=1 // pred_check_branch
      %16 = sbr.rel (0) target = $region5
    $region4: #{cgtn_generate_all.1} parent=1 // pred_region
      %s18 = ssub.s32 1024, 1024
      %19 = vsyncadd [#allocation3], %s18
      %s20 = sshll.u32 [#allocation2], 4
      %s21 = int_to_ptr.vmem [resolvable:$true] %s20
      %26 = dma.hbm_to_vmem [thread:$0]  %s0, 1024, %s21, [#allocation3], 128, 128, 8
    $region5: #{cgtn_generate_all.1} parent=1 // pred_fallthru
      _
    // Predicated region
    $region6: #{cgtn_generate_all.1} parent=1 // pred_check
      _
    $region7: #{cgtn_generate_all.1} parent=1 // pred_check_branch
      %28 = sbr.rel (0) target = $region9
    $region8: #{cgtn_generate_all.1} parent=1 // pred_region
      %s30 = ssub.s32 1024, 1024
      %31 = vsyncadd [#allocation5], %s30
      %s32 = sshll.u32 [#allocation4], 4
      %s33 = int_to_ptr.vmem [resolvable:$true] %s32
      %38 = dma.hbm_to_vmem [thread:$0]  %s1, 1024, %s33, [#allocation5], 128, 128, 8
    $region9: #{cgtn_generate_all.1} parent=1 // pred_fallthru
      _
    // Predicated region
    $region10: #{cgtn_generate_all.1} parent=1 // pred_check
      _
    $region11: #{cgtn_generate_all.1} parent=1 // pred_check_branch
      %40 = sbr.rel (0) target = $region13
    $region12: #{cgtn_generate_all.1} parent=1 // pred_region
      %s42 = ssub.s32 512, 512
      %43 = vsyncadd [#allocation5], %s42
      %s44 = sshll.u32 [#allocation6], 4
      %s45 = int_to_ptr.vmem [resolvable:$true] %s44
      %50 = dma.hbm_to_vmem [thread:$0]  %s2, 512, %s45, [#allocation5], 128, 128, 8
    $region13: #{cgtn_generate_all.1} parent=1 // pred_fallthru
      _
    // Predicated region
    $region14: #{cgtn_generate_all.1} parent=1 // pred_check
      _
    $region15: #{cgtn_generate_all.1} parent=1 // pred_check_branch
      %52 = sbr.rel (0) target = $region17
    $region16: #{cgtn_generate_all.1} parent=1 // pred_region
      %s54 = ssub.s32 256, 256
      %55 = vsyncadd [#allocation8], %s54
      %s56 = sshll.u32 [#allocation7], 4
      %s57 = int_to_ptr.vmem [resolvable:$true] %s56
      %62 = dma.hbm_to_vmem [thread:$0]  %s3, 256, %s57, [#allocation8], 128, 128, 8
    $region17: #{cgtn_generate_all.1} parent=1 // pred_fallthru
      _
    // Predicated region
    $region18: #{cgtn_generate_all.1} parent=1 // pred_check
      _
    $region19: #{cgtn_generate_all.1} parent=1 // pred_check_branch
      %64 = sbr.rel (0) target = $region21
    $region20: #{cgtn_generate_all.1} parent=1 // pred_region
      _
    $region21: #{cgtn_generate_all.1} parent=1 // pred_fallthru
      _
    // Predicated region
    $region22: #{cgtn_generate_all.1} parent=1 // pred_check
      _
    $region23: #{cgtn_generate_all.1} parent=1 // pred_check_branch
      %66 = sbr.rel (0) target = $region25
    $region24: #{cgtn_generate_all.1} parent=1 // pred_region
      %s68 = ssub.s32 2048, 2048
      %69 = vsyncadd [#allocation8], %s68
      %s70 = sshll.u32 [#allocation9], 4
      %s71 = int_to_ptr.vmem [resolvable:$true] %s70
      %76 = dma.hbm_to_vmem [thread:$0]  %s5, 2048, %s71, [#allocation8], 256, 256, 16
    $region25: #{cgtn_generate_all.1} parent=1 // pred_fallthru
      _
    // Predicated region
    $region26: #{cgtn_generate_all.1} parent=1 // pred_check
      _
    $region27: #{cgtn_generate_all.1} parent=1 // pred_check_branch
      %78 = sbr.rel (0) target = $region29
    $region28: #{cgtn_generate_all.1} parent=1 // pred_region
      _
    $region29: #{cgtn_generate_all.1} parent=1 // pred_fallthru
      _
    // Predicated region
    $region30: #{cgtn_generate_all.1} parent=1 // pred_check
      _
    $region31: #{cgtn_generate_all.1} parent=1 // pred_check_branch
      %80 = sbr.rel (0) target = $region33
    $region32: #{cgtn_generate_all.1} parent=1 // pred_region
      %81 = dma.done [#allocation3], 1024
    $region33: #{cgtn_generate_all.1} parent=1 // pred_fallthru
      _
    // Predicated region
    $region34: #{cgtn_generate_all.1} parent=1 // pred_check
      _
    $region35: #{cgtn_generate_all.1} parent=1 // pred_check_branch
      %83 = sbr.rel (0) target = $region37
    $region36: #{cgtn_generate_all.1} parent=1 // pred_region
      %84 = dma.done [#allocation5], 1024
    $region37: #{cgtn_generate_all.1} parent=1 // pred_fallthru
      _
    // Predicated region
    $region38: #{cgtn_generate_all.1} parent=1 // pred_check
      _
    $region39: #{cgtn_generate_all.1} parent=1 // pred_check_branch
      %86 = sbr.rel (0) target = $region41
    $region40: #{cgtn_generate_all.1} parent=1 // pred_region
      %87 = dma.done [#allocation5], 512
    $region41: #{cgtn_generate_all.1} parent=1 // pred_fallthru
      _
    // Predicated region
    $region42: #{cgtn_generate_all.1} parent=1 // pred_check
      _
    $region43: #{cgtn_generate_all.1} parent=1 // pred_check_branch
      %89 = sbr.rel (0) target = $region45
    $region44: #{cgtn_generate_all.1} parent=1 // pred_region
      %90 = dma.done [#allocation8], 256
    $region45: #{cgtn_generate_all.1} parent=1 // pred_fallthru
      _
    // Predicated region
    $region46: #{cgtn_generate_all.1} parent=1 // pred_check
      _
    $region47: #{cgtn_generate_all.1} parent=1 // pred_check_branch
      %92 = sbr.rel (0) target = $region49
    $region48: #{cgtn_generate_all.1} parent=1 // pred_region
      %93 = dma.done [#allocation8], 2048
    $region49: #{cgtn_generate_all.1} parent=1 // pred_fallthru
      _
    %v94 = vld [vmem:[#allocation2] sm:$0xff]
    %v95 = vld [vmem:[#allocation2 + $0x8] sm:$0xff]
    %v96 = vld [vmem:[#allocation2 + $0x10] sm:$0xff]
    %v97 = vld [vmem:[#allocation2 + $0x18] sm:$0xff]
    %v98 = vld [vmem:[#allocation2 + $0x20] sm:$0xff]
    %v99 = vld [vmem:[#allocation2 + $0x28] sm:$0xff]
    %v100 = vld [vmem:[#allocation2 + $0x30] sm:$0xff]
    %v101 = vld [vmem:[#allocation2 + $0x38] sm:$0xff]
    %v102 = vld [vmem:[#allocation6] sm:$0xff]
    %v103 = vld [vmem:[#allocation6 + $0x8] sm:$0xff]
    %v104 = vld [vmem:[#allocation6 + $0x10] sm:$0xff]
    %v105 = vld [vmem:[#allocation6 + $0x18] sm:$0xff]
    %v106 = vld [vmem:[#allocation4] sm:$0xff]
    %v107 = vld [vmem:[#allocation4 + $0x8] sm:$0xff]
    %v108 = vld [vmem:[#allocation4 + $0x10] sm:$0xff]
    %v109 = vld [vmem:[#allocation4 + $0x18] sm:$0xff]
    %v110 = vld [vmem:[#allocation4 + $0x20] sm:$0xff]
    %v111 = vld [vmem:[#allocation4 + $0x28] sm:$0xff]
    %v112 = vld [vmem:[#allocation4 + $0x30] sm:$0xff]
    %v113 = vld [vmem:[#allocation4 + $0x38] sm:$0xff]
    %v114 = vld [vmem:[#allocation7] sm:$0xff]
    %v115 = vld [vmem:[#allocation7 + $0x8] sm:$0x3]
    %vm116 = vcmask 80896
    %v118 = vsel %vm116, %v106, 0
    %v121 = vsel %vm116, %v107, 0
    %v124 = vsel %vm116, %v108, 0
    %v127 = vsel %vm116, %v109, 0
    %v130 = vsel %vm116, %v110, 0
    %v133 = vsel %vm116, %v111, 0
    %v136 = vsel %vm116, %v112, 0
    %v139 = vsel %vm116, %v113, 0
    %vm141 = vcmask 1041408
    %v143 = vsel %vm141, %v115, 0
    %145 = vmatprep.subr.mxu0 0.0
    %146 = vmatpush1.msra.mxu0 0.0
    %147 = vmatprep.subr.mxu0 0.0
    %148 = vmatpush1.msra.mxu0 0.0
    %149 = vmatprep.subr.mxu0 0.0
    %150 = vmatpush1.msra.mxu0 0.0
    %151 = vmatprep.subr.mxu0 0.0
    %152 = vmatpush1.msra.mxu0 0.0
    %153 = vmatprep.subr.mxu0 0.0
    %154 = vmatpush1.msra.mxu0 0.0
    %155 = vmatprep.subr.mxu0 0.0
    %156 = vmatpush1.msra.mxu0 0.0
    %157 = vmatprep.subr.mxu0 0.0
    %158 = vmatpush1.msra.mxu0 0.0
    %159 = vmatprep.subr.mxu0 0.0
    %160 = vmatpush1.msra.mxu0 0.0
    %161 = vmatprep.subr.mxu0 0.0
    %162 = vmatpush1.msra.mxu0 0.0
    %163 = vmatprep.subr.mxu0 0.0
    %164 = vmatpush1.msra.mxu0 0.0
    %165 = vmatprep.subr.mxu0 0.0
    %166 = vmatpush1.msra.mxu0 0.0
    %167 = vmatprep.subr.mxu0 0.0
    %168 = vmatpush1.msra.mxu0 0.0
    %169 = vmatprep.subr.mxu0 0.0
    %170 = vmatpush1.msra.mxu0 0.0
    %171 = vmatprep.subr.mxu0 0.0
    %172 = vmatpush1.msra.mxu0 0.0
    %173 = vmatprep.subr.mxu0 0.0
    %v174 = vand.u32 %v143, 4294901760
    %175 = vmatpush1.msra.mxu0 %v174
    %176 = vmatprep.subr.mxu0 0.0
    %v177 = vand.u32 %v114, 4294901760
    %178 = vmatpush1.msra.mxu0 %v177
    %179 = vmatprep.subr.mxu0 0.0
    %180 = vmatpush2.msra.mxu0 0.0
    %181 = vmatprep.subr.mxu0 0.0
    %182 = vmatpush2.msra.mxu0 0.0
    %183 = vmatprep.subr.mxu0 0.0
    %184 = vmatpush2.msra.mxu0 0.0
    %185 = vmatprep.subr.mxu0 0.0
    %186 = vmatpush2.msra.mxu0 0.0
    %187 = vmatprep.subr.mxu0 0.0
    %188 = vmatpush2.msra.mxu0 0.0
    %189 = vmatprep.subr.mxu0 0.0
    %190 = vmatpush2.msra.mxu0 0.0
    %191 = vmatprep.subr.mxu0 0.0
    %192 = vmatpush2.msra.mxu0 0.0
    %193 = vmatprep.subr.mxu0 0.0
    %194 = vmatpush2.msra.mxu0 0.0
    %195 = vmatprep.subr.mxu0 0.0
    %196 = vmatpush2.msra.mxu0 0.0
    %197 = vmatprep.subr.mxu0 0.0
    %198 = vmatpush2.msra.mxu0 0.0
    %199 = vmatprep.subr.mxu0 0.0
    %200 = vmatpush2.msra.mxu0 0.0
    %201 = vmatprep.subr.mxu0 0.0
    %202 = vmatpush2.msra.mxu0 0.0
    %203 = vmatprep.subr.mxu0 0.0
    %204 = vmatpush2.msra.mxu0 0.0
    %205 = vmatprep.subr.mxu0 0.0
    %206 = vmatpush2.msra.mxu0 0.0
    %207 = vmatprep.subr.mxu0 0.0
    %208 = vmatpush2.msra.mxu0 0.0
    %209 = vmatprep.subr.mxu0 0.0
    %210 = vmatpush2.msra.mxu0 0.0
    %211 = vmatprep.mubr.f32.mxu0 0.0
    %v212 = vand.u32 %v118, 4294901760
    %v213 = vsub.f32 %v118, %v212
    %v214 = vand.u32 %v213, 4294901760
    %v215 = vsub.f32 %v213, %v214
    %v216 = vand.u32 %v215, 4294901760
    %217 = vmatmul.mubr.f32.gmra.mxu0 %v216
    %v218 = vpop.f32.mrf.mxu0
    %v219 = vadd.f32 0.0, %v218
    %v220 = vpop.f32.mrf.mxu0
    %221 = vmatprep.mubr.f32.mxu0 0.0
    %v222 = vand.u32 %v121, 4294901760
    %v223 = vsub.f32 %v121, %v222
    %v224 = vand.u32 %v223, 4294901760
    %v225 = vsub.f32 %v223, %v224
    %v226 = vand.u32 %v225, 4294901760
    %227 = vmatmul.mubr.f32.gmra.mxu0 %v226
    %v228 = vpop.f32.mrf.mxu0
    %v229 = vadd.f32 0.0, %v228
    %v230 = vpop.f32.mrf.mxu0
    %231 = vmatprep.mubr.f32.mxu0 0.0
    %v232 = vand.u32 %v124, 4294901760
    %v233 = vsub.f32 %v124, %v232
    %v234 = vand.u32 %v233, 4294901760
    %v235 = vsub.f32 %v233, %v234
    %v236 = vand.u32 %v235, 4294901760
    %237 = vmatmul.mubr.f32.gmra.mxu0 %v236
    %v238 = vpop.f32.mrf.mxu0
    %v239 = vadd.f32 0.0, %v238
    %v240 = vpop.f32.mrf.mxu0
    %241 = vmatprep.mubr.f32.mxu0 0.0
    %v242 = vand.u32 %v127, 4294901760
    %v243 = vsub.f32 %v127, %v242
    %v244 = vand.u32 %v243, 4294901760
    %v245 = vsub.f32 %v243, %v244
    %v246 = vand.u32 %v245, 4294901760
    %247 = vmatmul.mubr.f32.gmra.mxu0 %v246
    %v248 = vpop.f32.mrf.mxu0
    %v249 = vadd.f32 0.0, %v248
    %v250 = vpop.f32.mrf.mxu0
    %251 = vmatprep.mubr.f32.mxu0 0.0
    %v252 = vand.u32 %v130, 4294901760
    %v253 = vsub.f32 %v130, %v252
    %v254 = vand.u32 %v253, 4294901760
    %v255 = vsub.f32 %v253, %v254
    %v256 = vand.u32 %v255, 4294901760
    %257 = vmatmul.mubr.f32.gmra.mxu0 %v256
    %v258 = vpop.f32.mrf.mxu0
    %v259 = vadd.f32 0.0, %v258
    %v260 = vpop.f32.mrf.mxu0
    %261 = vmatprep.mubr.f32.mxu0 0.0
    %v262 = vand.u32 %v133, 4294901760
    %v263 = vsub.f32 %v133, %v262
    %v264 = vand.u32 %v263, 4294901760
    %v265 = vsub.f32 %v263, %v264
    %v266 = vand.u32 %v265, 4294901760
    %267 = vmatmul.mubr.f32.gmra.mxu0 %v266
    %v268 = vpop.f32.mrf.mxu0
    %v269 = vadd.f32 0.0, %v268
    %v270 = vpop.f32.mrf.mxu0
    %271 = vmatprep.mubr.f32.mxu0 0.0
    %v272 = vand.u32 %v136, 4294901760
    %v273 = vsub.f32 %v136, %v272
    %v274 = vand.u32 %v273, 4294901760
    %v275 = vsub.f32 %v273, %v274
    %v276 = vand.u32 %v275, 4294901760
    %277 = vmatmul.mubr.f32.gmra.mxu0 %v276
    %v278 = vpop.f32.mrf.mxu0
    %v279 = vadd.f32 0.0, %v278
    %v280 = vpop.f32.mrf.mxu0
    %281 = vmatprep.mubr.f32.mxu0 0.0
    %v282 = vand.u32 %v139, 4294901760
    %v283 = vsub.f32 %v139, %v282
    %v284 = vand.u32 %v283, 4294901760
    %v285 = vsub.f32 %v283, %v284
    %v286 = vand.u32 %v285, 4294901760
    %287 = vmatmul.mubr.f32.gmra.mxu0 %v286
    %v288 = vpop.f32.mrf.mxu0
    %v289 = vadd.f32 0.0, %v288
    %v290 = vpop.f32.mrf.mxu0
    %291 = vdwg.mxu0
    %292 = vmatprep.subr.mxu0 0.0
    %293 = vmatpush1.msra.mxu0 0.0
    %294 = vmatprep.subr.mxu0 0.0
    %295 = vmatpush1.msra.mxu0 0.0
    %296 = vmatprep.subr.mxu0 0.0
    %297 = vmatpush1.msra.mxu0 0.0
    %298 = vmatprep.subr.mxu0 0.0
    %299 = vmatpush1.msra.mxu0 0.0
    %300 = vmatprep.subr.mxu0 0.0
    %301 = vmatpush1.msra.mxu0 0.0
    %302 = vmatprep.subr.mxu0 0.0
    %303 = vmatpush1.msra.mxu0 0.0
    %304 = vmatprep.subr.mxu0 0.0
    %305 = vmatpush1.msra.mxu0 0.0
    %306 = vmatprep.subr.mxu0 0.0
    %307 = vmatpush1.msra.mxu0 0.0
    %308 = vmatprep.subr.mxu0 0.0
    %309 = vmatpush1.msra.mxu0 0.0
    %310 = vmatprep.subr.mxu0 0.0
    %311 = vmatpush1.msra.mxu0 0.0
    %312 = vmatprep.subr.mxu0 0.0
    %313 = vmatpush1.msra.mxu0 0.0
    %314 = vmatprep.subr.mxu0 0.0
    %315 = vmatpush1.msra.mxu0 0.0
    %316 = vmatprep.subr.mxu0 0.0
    %317 = vmatpush1.msra.mxu0 0.0
    %318 = vmatprep.subr.mxu0 0.0
    %319 = vmatpush1.msra.mxu0 0.0
    %320 = vmatprep.subr.mxu0 0.0
    %v321 = vand.u32 %v143, 4294901760
    %v322 = vsub.f32 %v143, %v321
    %v323 = vand.u32 %v322, 4294901760
    %v324 = vsub.f32 %v322, %v323
    %v325 = vand.u32 %v324, 4294901760
    %326 = vmatpush1.msra.mxu0 %v325
    %327 = vmatprep.subr.mxu0 0.0
    %v328 = vand.u32 %v114, 4294901760
    %v329 = vsub.f32 %v114, %v328
    %v330 = vand.u32 %v329, 4294901760
    %v331 = vsub.f32 %v329, %v330
    %v332 = vand.u32 %v331, 4294901760
    %333 = vmatpush1.msra.mxu0 %v332
    %334 = vmatprep.subr.mxu0 0.0
    %335 = vmatpush2.msra.mxu0 0.0
    %336 = vmatprep.subr.mxu0 0.0
    %337 = vmatpush2.msra.mxu0 0.0
    %338 = vmatprep.subr.mxu0 0.0
    %339 = vmatpush2.msra.mxu0 0.0
    %340 = vmatprep.subr.mxu0 0.0
    %341 = vmatpush2.msra.mxu0 0.0
    %342 = vmatprep.subr.mxu0 0.0
    %343 = vmatpush2.msra.mxu0 0.0
    %344 = vmatprep.subr.mxu0 0.0
    %345 = vmatpush2.msra.mxu0 0.0
    %346 = vmatprep.subr.mxu0 0.0
    %347 = vmatpush2.msra.mxu0 0.0
    %348 = vmatprep.subr.mxu0 0.0
    %349 = vmatpush2.msra.mxu0 0.0
    %350 = vmatprep.subr.mxu0 0.0
    %351 = vmatpush2.msra.mxu0 0.0
    %352 = vmatprep.subr.mxu0 0.0
    %353 = vmatpush2.msra.mxu0 0.0
    %354 = vmatprep.subr.mxu0 0.0
    %355 = vmatpush2.msra.mxu0 0.0
    %356 = vmatprep.subr.mxu0 0.0
    %357 = vmatpush2.msra.mxu0 0.0
    %358 = vmatprep.subr.mxu0 0.0
    %359 = vmatpush2.msra.mxu0 0.0
    %360 = vmatprep.subr.mxu0 0.0
    %361 = vmatpush2.msra.mxu0 0.0
    %362 = vmatprep.subr.mxu0 0.0
    %363 = vmatpush2.msra.mxu0 0.0
    %364 = vmatprep.subr.mxu0 0.0
    %365 = vmatpush2.msra.mxu0 0.0
    %366 = vmatprep.mubr.f32.mxu0 0.0
    %v367 = vand.u32 %v118, 4294901760
    %368 = vmatmul.mubr.f32.gmra.mxu0 %v367
    %v369 = vpop.f32.mrf.mxu0
    %v370 = vadd.f32 %v219, %v369
    %v371 = vpop.f32.mrf.mxu0
    %372 = vmatprep.mubr.f32.mxu0 0.0
    %v373 = vand.u32 %v121, 4294901760
    %374 = vmatmul.mubr.f32.gmra.mxu0 %v373
    %v375 = vpop.f32.mrf.mxu0
    %v376 = vadd.f32 %v229, %v375
    %v377 = vpop.f32.mrf.mxu0
    %378 = vmatprep.mubr.f32.mxu0 0.0
    %v379 = vand.u32 %v124, 4294901760
    %380 = vmatmul.mubr.f32.gmra.mxu0 %v379
    %v381 = vpop.f32.mrf.mxu0
    %v382 = vadd.f32 %v239, %v381
    %v383 = vpop.f32.mrf.mxu0
    %384 = vmatprep.mubr.f32.mxu0 0.0
    %v385 = vand.u32 %v127, 4294901760
    %386 = vmatmul.mubr.f32.gmra.mxu0 %v385
    %v387 = vpop.f32.mrf.mxu0
    %v388 = vadd.f32 %v249, %v387
    %v389 = vpop.f32.mrf.mxu0
    %390 = vmatprep.mubr.f32.mxu0 0.0
    %v391 = vand.u32 %v130, 4294901760
    %392 = vmatmul.mubr.f32.gmra.mxu0 %v391
    %v393 = vpop.f32.mrf.mxu0
    %v394 = vadd.f32 %v259, %v393
    %v395 = vpop.f32.mrf.mxu0
    %396 = vmatprep.mubr.f32.mxu0 0.0
    %v397 = vand.u32 %v133, 4294901760
    %398 = vmatmul.mubr.f32.gmra.mxu0 %v397
    %v399 = vpop.f32.mrf.mxu0
    %v400 = vadd.f32 %v269, %v399
    %v401 = vpop.f32.mrf.mxu0
    %402 = vmatprep.mubr.f32.mxu0 0.0
    %v403 = vand.u32 %v136, 4294901760
    %404 = vmatmul.mubr.f32.gmra.mxu0 %v403
    %v405 = vpop.f32.mrf.mxu0
    %v406 = vadd.f32 %v279, %v405
    %v407 = vpop.f32.mrf.mxu0
    %408 = vmatprep.mubr.f32.mxu0 0.0
    %v409 = vand.u32 %v139, 4294901760
    %410 = vmatmul.mubr.f32.gmra.mxu0 %v409
    %v411 = vpop.f32.mrf.mxu0
    %v412 = vadd.f32 %v289, %v411
    %v413 = vpop.f32.mrf.mxu0
    %414 = vdwg.mxu0
    %415 = vmatprep.subr.mxu0 0.0
    %416 = vmatpush1.msra.mxu0 0.0
    %417 = vmatprep.subr.mxu0 0.0
    %418 = vmatpush1.msra.mxu0 0.0
    %419 = vmatprep.subr.mxu0 0.0
    %420 = vmatpush1.msra.mxu0 0.0
    %421 = vmatprep.subr.mxu0 0.0
    %422 = vmatpush1.msra.mxu0 0.0
    %423 = vmatprep.subr.mxu0 0.0
    %424 = vmatpush1.msra.mxu0 0.0
    %425 = vmatprep.subr.mxu0 0.0
    %426 = vmatpush1.msra.mxu0 0.0
    %427 = vmatprep.subr.mxu0 0.0
    %428 = vmatpush1.msra.mxu0 0.0
    %429 = vmatprep.subr.mxu0 0.0
    %430 = vmatpush1.msra.mxu0 0.0
    %431 = vmatprep.subr.mxu0 0.0
    %432 = vmatpush1.msra.mxu0 0.0
    %433 = vmatprep.subr.mxu0 0.0
    %434 = vmatpush1.msra.mxu0 0.0
    %435 = vmatprep.subr.mxu0 0.0
    %436 = vmatpush1.msra.mxu0 0.0
    %437 = vmatprep.subr.mxu0 0.0
    %438 = vmatpush1.msra.mxu0 0.0
    %439 = vmatprep.subr.mxu0 0.0
    %440 = vmatpush1.msra.mxu0 0.0
    %441 = vmatprep.subr.mxu0 0.0
    %442 = vmatpush1.msra.mxu0 0.0
    %443 = vmatprep.subr.mxu0 0.0
    %v444 = vand.u32 %v143, 4294901760
    %v445 = vsub.f32 %v143, %v444
    %446 = vmatpush1.msra.mxu0 %v445
    %447 = vmatprep.subr.mxu0 0.0
    %v448 = vand.u32 %v114, 4294901760
    %v449 = vsub.f32 %v114, %v448
    %450 = vmatpush1.msra.mxu0 %v449
    %451 = vmatprep.subr.mxu0 0.0
    %452 = vmatpush2.msra.mxu0 0.0
    %453 = vmatprep.subr.mxu0 0.0
    %454 = vmatpush2.msra.mxu0 0.0
    %455 = vmatprep.subr.mxu0 0.0
    %456 = vmatpush2.msra.mxu0 0.0
    %457 = vmatprep.subr.mxu0 0.0
    %458 = vmatpush2.msra.mxu0 0.0
    %459 = vmatprep.subr.mxu0 0.0
    %460 = vmatpush2.msra.mxu0 0.0
    %461 = vmatprep.subr.mxu0 0.0
    %462 = vmatpush2.msra.mxu0 0.0
    %463 = vmatprep.subr.mxu0 0.0
    %464 = vmatpush2.msra.mxu0 0.0
    %465 = vmatprep.subr.mxu0 0.0
    %466 = vmatpush2.msra.mxu0 0.0
    %467 = vmatprep.subr.mxu0 0.0
    %468 = vmatpush2.msra.mxu0 0.0
    %469 = vmatprep.subr.mxu0 0.0
    %470 = vmatpush2.msra.mxu0 0.0
    %471 = vmatprep.subr.mxu0 0.0
    %472 = vmatpush2.msra.mxu0 0.0
    %473 = vmatprep.subr.mxu0 0.0
    %474 = vmatpush2.msra.mxu0 0.0
    %475 = vmatprep.subr.mxu0 0.0
    %476 = vmatpush2.msra.mxu0 0.0
    %477 = vmatprep.subr.mxu0 0.0
    %478 = vmatpush2.msra.mxu0 0.0
    %479 = vmatprep.subr.mxu0 0.0
    %480 = vmatpush2.msra.mxu0 0.0
    %481 = vmatprep.subr.mxu0 0.0
    %482 = vmatpush2.msra.mxu0 0.0
    %483 = vmatprep.mubr.f32.mxu0 0.0
    %v484 = vand.u32 %v118, 4294901760
    %v485 = vsub.f32 %v118, %v484
    %486 = vmatmul.mubr.f32.gmra.mxu0 %v485
    %v487 = vpop.f32.mrf.mxu0
    %v488 = vadd.f32 %v370, %v487
    %v489 = vpop.f32.mrf.mxu0
    %490 = vmatprep.mubr.f32.mxu0 0.0
    %v491 = vand.u32 %v121, 4294901760
    %v492 = vsub.f32 %v121, %v491
    %493 = vmatmul.mubr.f32.gmra.mxu0 %v492
    %v494 = vpop.f32.mrf.mxu0
    %v495 = vadd.f32 %v376, %v494
    %v496 = vpop.f32.mrf.mxu0
    %497 = vmatprep.mubr.f32.mxu0 0.0
    %v498 = vand.u32 %v124, 4294901760
    %v499 = vsub.f32 %v124, %v498
    %500 = vmatmul.mubr.f32.gmra.mxu0 %v499
    %v501 = vpop.f32.mrf.mxu0
    %v502 = vadd.f32 %v382, %v501
    %v503 = vpop.f32.mrf.mxu0
    %504 = vmatprep.mubr.f32.mxu0 0.0
    %v505 = vand.u32 %v127, 4294901760
    %v506 = vsub.f32 %v127, %v505
    %507 = vmatmul.mubr.f32.gmra.mxu0 %v506
    %v508 = vpop.f32.mrf.mxu0
    %v509 = vadd.f32 %v388, %v508
    %v510 = vpop.f32.mrf.mxu0
    %511 = vmatprep.mubr.f32.mxu0 0.0
    %v512 = vand.u32 %v130, 4294901760
    %v513 = vsub.f32 %v130, %v512
    %514 = vmatmul.mubr.f32.gmra.mxu0 %v513
    %v515 = vpop.f32.mrf.mxu0
    %v516 = vadd.f32 %v394, %v515
    %v517 = vpop.f32.mrf.mxu0
    %518 = vmatprep.mubr.f32.mxu0 0.0
    %v519 = vand.u32 %v133, 4294901760
    %v520 = vsub.f32 %v133, %v519
    %521 = vmatmul.mubr.f32.gmra.mxu0 %v520
    %v522 = vpop.f32.mrf.mxu0
    %v523 = vadd.f32 %v400, %v522
    %v524 = vpop.f32.mrf.mxu0
    %525 = vmatprep.mubr.f32.mxu0 0.0
    %v526 = vand.u32 %v136, 4294901760
    %v527 = vsub.f32 %v136, %v526
    %528 = vmatmul.mubr.f32.gmra.mxu0 %v527
    %v529 = vpop.f32.mrf.mxu0
    %v530 = vadd.f32 %v406, %v529
    %v531 = vpop.f32.mrf.mxu0
    %532 = vmatprep.mubr.f32.mxu0 0.0
    %v533 = vand.u32 %v139, 4294901760
    %v534 = vsub.f32 %v139, %v533
    %535 = vmatmul.mubr.f32.gmra.mxu0 %v534
    %v536 = vpop.f32.mrf.mxu0
    %v537 = vadd.f32 %v412, %v536
    %v538 = vpop.f32.mrf.mxu0
    %539 = vdwg.mxu0
    %540 = vmatprep.subr.mxu0 0.0
    %541 = vmatpush1.msra.mxu0 0.0
    %542 = vmatprep.subr.mxu0 0.0
    %543 = vmatpush1.msra.mxu0 0.0
    %544 = vmatprep.subr.mxu0 0.0
    %545 = vmatpush1.msra.mxu0 0.0
    %546 = vmatprep.subr.mxu0 0.0
    %547 = vmatpush1.msra.mxu0 0.0
    %548 = vmatprep.subr.mxu0 0.0
    %549 = vmatpush1.msra.mxu0 0.0
    %550 = vmatprep.subr.mxu0 0.0
    %551 = vmatpush1.msra.mxu0 0.0
    %552 = vmatprep.subr.mxu0 0.0
    %553 = vmatpush1.msra.mxu0 0.0
    %554 = vmatprep.subr.mxu0 0.0
    %555 = vmatpush1.msra.mxu0 0.0
    %556 = vmatprep.subr.mxu0 0.0
    %557 = vmatpush1.msra.mxu0 0.0
    %558 = vmatprep.subr.mxu0 0.0
    %559 = vmatpush1.msra.mxu0 0.0
    %560 = vmatprep.subr.mxu0 0.0
    %561 = vmatpush1.msra.mxu0 0.0
    %562 = vmatprep.subr.mxu0 0.0
    %563 = vmatpush1.msra.mxu0 0.0
    %564 = vmatprep.subr.mxu0 0.0
    %565 = vmatpush1.msra.mxu0 0.0
    %566 = vmatprep.subr.mxu0 0.0
    %567 = vmatpush1.msra.mxu0 0.0
    %568 = vmatprep.subr.mxu0 0.0
    %v569 = vand.u32 %v143, 4294901760
    %570 = vmatpush1.msra.mxu0 %v569
    %571 = vmatprep.subr.mxu0 0.0
    %v572 = vand.u32 %v114, 4294901760
    %573 = vmatpush1.msra.mxu0 %v572
    %574 = vmatprep.subr.mxu0 0.0
    %575 = vmatpush2.msra.mxu0 0.0
    %576 = vmatprep.subr.mxu0 0.0
    %577 = vmatpush2.msra.mxu0 0.0
    %578 = vmatprep.subr.mxu0 0.0
    %579 = vmatpush2.msra.mxu0 0.0
    %580 = vmatprep.subr.mxu0 0.0
    %581 = vmatpush2.msra.mxu0 0.0
    %582 = vmatprep.subr.mxu0 0.0
    %583 = vmatpush2.msra.mxu0 0.0
    %584 = vmatprep.subr.mxu0 0.0
    %585 = vmatpush2.msra.mxu0 0.0
    %586 = vmatprep.subr.mxu0 0.0
    %587 = vmatpush2.msra.mxu0 0.0
    %588 = vmatprep.subr.mxu0 0.0
    %589 = vmatpush2.msra.mxu0 0.0
    %590 = vmatprep.subr.mxu0 0.0
    %591 = vmatpush2.msra.mxu0 0.0
    %592 = vmatprep.subr.mxu0 0.0
    %593 = vmatpush2.msra.mxu0 0.0
    %594 = vmatprep.subr.mxu0 0.0
    %595 = vmatpush2.msra.mxu0 0.0
    %596 = vmatprep.subr.mxu0 0.0
    %597 = vmatpush2.msra.mxu0 0.0
    %598 = vmatprep.subr.mxu0 0.0
    %599 = vmatpush2.msra.mxu0 0.0
    %600 = vmatprep.subr.mxu0 0.0
    %601 = vmatpush2.msra.mxu0 0.0
    %602 = vmatprep.subr.mxu0 0.0
    %603 = vmatpush2.msra.mxu0 0.0
    %604 = vmatprep.subr.mxu0 0.0
    %605 = vmatpush2.msra.mxu0 0.0
    %606 = vmatprep.mubr.f32.mxu0 0.0
    %v607 = vand.u32 %v118, 4294901760
    %v608 = vsub.f32 %v118, %v607
    %v609 = vand.u32 %v608, 4294901760
    %610 = vmatmul.mubr.f32.gmra.mxu0 %v609
    %v611 = vpop.f32.mrf.mxu0
    %v612 = vadd.f32 %v488, %v611
    %v613 = vpop.f32.mrf.mxu0
    %614 = vmatprep.mubr.f32.mxu0 0.0
    %v615 = vand.u32 %v121, 4294901760
    %v616 = vsub.f32 %v121, %v615
    %v617 = vand.u32 %v616, 4294901760
    %618 = vmatmul.mubr.f32.gmra.mxu0 %v617
    %v619 = vpop.f32.mrf.mxu0
    %v620 = vadd.f32 %v495, %v619
    %v621 = vpop.f32.mrf.mxu0
    %622 = vmatprep.mubr.f32.mxu0 0.0
    %v623 = vand.u32 %v124, 4294901760
    %v624 = vsub.f32 %v124, %v623
    %v625 = vand.u32 %v624, 4294901760
    %626 = vmatmul.mubr.f32.gmra.mxu0 %v625
    %v627 = vpop.f32.mrf.mxu0
    %v628 = vadd.f32 %v502, %v627
    %v629 = vpop.f32.mrf.mxu0
    %630 = vmatprep.mubr.f32.mxu0 0.0
    %v631 = vand.u32 %v127, 4294901760
    %v632 = vsub.f32 %v127, %v631
    %v633 = vand.u32 %v632, 4294901760
    %634 = vmatmul.mubr.f32.gmra.mxu0 %v633
    %v635 = vpop.f32.mrf.mxu0
    %v636 = vadd.f32 %v509, %v635
    %v637 = vpop.f32.mrf.mxu0
    %638 = vmatprep.mubr.f32.mxu0 0.0
    %v639 = vand.u32 %v130, 4294901760
    %v640 = vsub.f32 %v130, %v639
    %v641 = vand.u32 %v640, 4294901760
    %642 = vmatmul.mubr.f32.gmra.mxu0 %v641
    %v643 = vpop.f32.mrf.mxu0
    %v644 = vadd.f32 %v516, %v643
    %v645 = vpop.f32.mrf.mxu0
    %646 = vmatprep.mubr.f32.mxu0 0.0
    %v647 = vand.u32 %v133, 4294901760
    %v648 = vsub.f32 %v133, %v647
    %v649 = vand.u32 %v648, 4294901760
    %650 = vmatmul.mubr.f32.gmra.mxu0 %v649
    %v651 = vpop.f32.mrf.mxu0
    %v652 = vadd.f32 %v523, %v651
    %v653 = vpop.f32.mrf.mxu0
    %654 = vmatprep.mubr.f32.mxu0 0.0
    %v655 = vand.u32 %v136, 4294901760
    %v656 = vsub.f32 %v136, %v655
    %v657 = vand.u32 %v656, 4294901760
    %658 = vmatmul.mubr.f32.gmra.mxu0 %v657
    %v659 = vpop.f32.mrf.mxu0
    %v660 = vadd.f32 %v530, %v659
    %v661 = vpop.f32.mrf.mxu0
    %662 = vmatprep.mubr.f32.mxu0 0.0
    %v663 = vand.u32 %v139, 4294901760
    %v664 = vsub.f32 %v139, %v663
    %v665 = vand.u32 %v664, 4294901760
    %666 = vmatmul.mubr.f32.gmra.mxu0 %v665
    %v667 = vpop.f32.mrf.mxu0
    %v668 = vadd.f32 %v537, %v667
    %v669 = vpop.f32.mrf.mxu0
    %670 = vdwg.mxu0
    %671 = vmatprep.subr.mxu0 0.0
    %672 = vmatpush1.msra.mxu0 0.0
    %673 = vmatprep.subr.mxu0 0.0
    %674 = vmatpush1.msra.mxu0 0.0
    %675 = vmatprep.subr.mxu0 0.0
    %676 = vmatpush1.msra.mxu0 0.0
    %677 = vmatprep.subr.mxu0 0.0
    %678 = vmatpush1.msra.mxu0 0.0
    %679 = vmatprep.subr.mxu0 0.0
    %680 = vmatpush1.msra.mxu0 0.0
    %681 = vmatprep.subr.mxu0 0.0
    %682 = vmatpush1.msra.mxu0 0.0
    %683 = vmatprep.subr.mxu0 0.0
    %684 = vmatpush1.msra.mxu0 0.0
    %685 = vmatprep.subr.mxu0 0.0
    %686 = vmatpush1.msra.mxu0 0.0
    %687 = vmatprep.subr.mxu0 0.0
    %688 = vmatpush1.msra.mxu0 0.0
    %689 = vmatprep.subr.mxu0 0.0
    %690 = vmatpush1.msra.mxu0 0.0
    %691 = vmatprep.subr.mxu0 0.0
    %692 = vmatpush1.msra.mxu0 0.0
    %693 = vmatprep.subr.mxu0 0.0
    %694 = vmatpush1.msra.mxu0 0.0
    %695 = vmatprep.subr.mxu0 0.0
    %696 = vmatpush1.msra.mxu0 0.0
    %697 = vmatprep.subr.mxu0 0.0
    %698 = vmatpush1.msra.mxu0 0.0
    %699 = vmatprep.subr.mxu0 0.0
    %v700 = vand.u32 %v143, 4294901760
    %v701 = vsub.f32 %v143, %v700
    %v702 = vand.u32 %v701, 4294901760
    %703 = vmatpush1.msra.mxu0 %v702
    %704 = vmatprep.subr.mxu0 0.0
    %v705 = vand.u32 %v114, 4294901760
    %v706 = vsub.f32 %v114, %v705
    %v707 = vand.u32 %v706, 4294901760
    %708 = vmatpush1.msra.mxu0 %v707
    %709 = vmatprep.subr.mxu0 0.0
    %710 = vmatpush2.msra.mxu0 0.0
    %711 = vmatprep.subr.mxu0 0.0
    %712 = vmatpush2.msra.mxu0 0.0
    %713 = vmatprep.subr.mxu0 0.0
    %714 = vmatpush2.msra.mxu0 0.0
    %715 = vmatprep.subr.mxu0 0.0
    %716 = vmatpush2.msra.mxu0 0.0
    %717 = vmatprep.subr.mxu0 0.0
    %718 = vmatpush2.msra.mxu0 0.0
    %719 = vmatprep.subr.mxu0 0.0
    %720 = vmatpush2.msra.mxu0 0.0
    %721 = vmatprep.subr.mxu0 0.0
    %722 = vmatpush2.msra.mxu0 0.0
    %723 = vmatprep.subr.mxu0 0.0
    %724 = vmatpush2.msra.mxu0 0.0
    %725 = vmatprep.subr.mxu0 0.0
    %726 = vmatpush2.msra.mxu0 0.0
    %727 = vmatprep.subr.mxu0 0.0
    %728 = vmatpush2.msra.mxu0 0.0
    %729 = vmatprep.subr.mxu0 0.0
    %730 = vmatpush2.msra.mxu0 0.0
    %731 = vmatprep.subr.mxu0 0.0
    %732 = vmatpush2.msra.mxu0 0.0
    %733 = vmatprep.subr.mxu0 0.0
    %734 = vmatpush2.msra.mxu0 0.0
    %735 = vmatprep.subr.mxu0 0.0
    %736 = vmatpush2.msra.mxu0 0.0
    %737 = vmatprep.subr.mxu0 0.0
    %738 = vmatpush2.msra.mxu0 0.0
    %739 = vmatprep.subr.mxu0 0.0
    %740 = vmatpush2.msra.mxu0 0.0
    %741 = vmatprep.mubr.f32.mxu0 0.0
    %v742 = vand.u32 %v118, 4294901760
    %743 = vmatmul.mubr.f32.gmra.mxu0 %v742
    %v744 = vpop.f32.mrf.mxu0
    %v745 = vadd.f32 %v612, %v744
    %v746 = vpop.f32.mrf.mxu0
    %747 = vmatprep.mubr.f32.mxu0 0.0
    %v748 = vand.u32 %v121, 4294901760
    %749 = vmatmul.mubr.f32.gmra.mxu0 %v748
    %v750 = vpop.f32.mrf.mxu0
    %v751 = vadd.f32 %v620, %v750
    %v752 = vpop.f32.mrf.mxu0
    %753 = vmatprep.mubr.f32.mxu0 0.0
    %v754 = vand.u32 %v124, 4294901760
    %755 = vmatmul.mubr.f32.gmra.mxu0 %v754
    %v756 = vpop.f32.mrf.mxu0
    %v757 = vadd.f32 %v628, %v756
    %v758 = vpop.f32.mrf.mxu0
    %759 = vmatprep.mubr.f32.mxu0 0.0
    %v760 = vand.u32 %v127, 4294901760
    %761 = vmatmul.mubr.f32.gmra.mxu0 %v760
    %v762 = vpop.f32.mrf.mxu0
    %v763 = vadd.f32 %v636, %v762
    %v764 = vpop.f32.mrf.mxu0
    %765 = vmatprep.mubr.f32.mxu0 0.0
    %v766 = vand.u32 %v130, 4294901760
    %767 = vmatmul.mubr.f32.gmra.mxu0 %v766
    %v768 = vpop.f32.mrf.mxu0
    %v769 = vadd.f32 %v644, %v768
    %v770 = vpop.f32.mrf.mxu0
    %771 = vmatprep.mubr.f32.mxu0 0.0
    %v772 = vand.u32 %v133, 4294901760
    %773 = vmatmul.mubr.f32.gmra.mxu0 %v772
    %v774 = vpop.f32.mrf.mxu0
    %v775 = vadd.f32 %v652, %v774
    %v776 = vpop.f32.mrf.mxu0
    %777 = vmatprep.mubr.f32.mxu0 0.0
    %v778 = vand.u32 %v136, 4294901760
    %779 = vmatmul.mubr.f32.gmra.mxu0 %v778
    %v780 = vpop.f32.mrf.mxu0
    %v781 = vadd.f32 %v660, %v780
    %v782 = vpop.f32.mrf.mxu0
    %783 = vmatprep.mubr.f32.mxu0 0.0
    %v784 = vand.u32 %v139, 4294901760
    %785 = vmatmul.mubr.f32.gmra.mxu0 %v784
    %v786 = vpop.f32.mrf.mxu0
    %v787 = vadd.f32 %v668, %v786
    %v788 = vpop.f32.mrf.mxu0
    %789 = vdwg.mxu0
    %790 = vmatprep.subr.mxu0 0.0
    %791 = vmatpush1.msra.mxu0 0.0
    %792 = vmatprep.subr.mxu0 0.0
    %793 = vmatpush1.msra.mxu0 0.0
    %794 = vmatprep.subr.mxu0 0.0
    %795 = vmatpush1.msra.mxu0 0.0
    %796 = vmatprep.subr.mxu0 0.0
    %797 = vmatpush1.msra.mxu0 0.0
    %798 = vmatprep.subr.mxu0 0.0
    %799 = vmatpush1.msra.mxu0 0.0
    %800 = vmatprep.subr.mxu0 0.0
    %801 = vmatpush1.msra.mxu0 0.0
    %802 = vmatprep.subr.mxu0 0.0
    %803 = vmatpush1.msra.mxu0 0.0
    %804 = vmatprep.subr.mxu0 0.0
    %805 = vmatpush1.msra.mxu0 0.0
    %806 = vmatprep.subr.mxu0 0.0
    %807 = vmatpush1.msra.mxu0 0.0
    %808 = vmatprep.subr.mxu0 0.0
    %809 = vmatpush1.msra.mxu0 0.0
    %810 = vmatprep.subr.mxu0 0.0
    %811 = vmatpush1.msra.mxu0 0.0
    %812 = vmatprep.subr.mxu0 0.0
    %813 = vmatpush1.msra.mxu0 0.0
    %814 = vmatprep.subr.mxu0 0.0
    %815 = vmatpush1.msra.mxu0 0.0
    %816 = vmatprep.subr.mxu0 0.0
    %817 = vmatpush1.msra.mxu0 0.0
    %818 = vmatprep.subr.mxu0 0.0
    %v819 = vand.u32 %v143, 4294901760
    %820 = vmatpush1.msra.mxu0 %v819
    %821 = vmatprep.subr.mxu0 0.0
    %v822 = vand.u32 %v114, 4294901760
    %823 = vmatpush1.msra.mxu0 %v822
    %824 = vmatprep.subr.mxu0 0.0
    %825 = vmatpush2.msra.mxu0 0.0
    %826 = vmatprep.subr.mxu0 0.0
    %827 = vmatpush2.msra.mxu0 0.0
    %828 = vmatprep.subr.mxu0 0.0
    %829 = vmatpush2.msra.mxu0 0.0
    %830 = vmatprep.subr.mxu0 0.0
    %831 = vmatpush2.msra.mxu0 0.0
    %832 = vmatprep.subr.mxu0 0.0
    %833 = vmatpush2.msra.mxu0 0.0
    %834 = vmatprep.subr.mxu0 0.0
    %835 = vmatpush2.msra.mxu0 0.0
    %836 = vmatprep.subr.mxu0 0.0
    %837 = vmatpush2.msra.mxu0 0.0
    %838 = vmatprep.subr.mxu0 0.0
    %839 = vmatpush2.msra.mxu0 0.0
    %840 = vmatprep.subr.mxu0 0.0
    %841 = vmatpush2.msra.mxu0 0.0
    %842 = vmatprep.subr.mxu0 0.0
    %843 = vmatpush2.msra.mxu0 0.0
    %844 = vmatprep.subr.mxu0 0.0
    %845 = vmatpush2.msra.mxu0 0.0
    %846 = vmatprep.subr.mxu0 0.0
    %847 = vmatpush2.msra.mxu0 0.0
    %848 = vmatprep.subr.mxu0 0.0
    %849 = vmatpush2.msra.mxu0 0.0
    %850 = vmatprep.subr.mxu0 0.0
    %851 = vmatpush2.msra.mxu0 0.0
    %852 = vmatprep.subr.mxu0 0.0
    %853 = vmatpush2.msra.mxu0 0.0
    %854 = vmatprep.subr.mxu0 0.0
    %855 = vmatpush2.msra.mxu0 0.0
    %856 = vmatprep.mubr.f32.mxu0 0.0
    %v857 = vand.u32 %v118, 4294901760
    %858 = vmatmul.mubr.f32.gmra.mxu0 %v857
    %v859 = vpop.f32.mrf.mxu0
    %v860 = vadd.f32 %v745, %v859
    %v861 = vpop.f32.mrf.mxu0
    %862 = vmatprep.mubr.f32.mxu0 0.0
    %v863 = vand.u32 %v121, 4294901760
    %864 = vmatmul.mubr.f32.gmra.mxu0 %v863
    %v865 = vpop.f32.mrf.mxu0
    %v866 = vadd.f32 %v751, %v865
    %v867 = vpop.f32.mrf.mxu0
    %868 = vmatprep.mubr.f32.mxu0 0.0
    %v869 = vand.u32 %v124, 4294901760
    %870 = vmatmul.mubr.f32.gmra.mxu0 %v869
    %v871 = vpop.f32.mrf.mxu0
    %v872 = vadd.f32 %v757, %v871
    %v873 = vpop.f32.mrf.mxu0
    %874 = vmatprep.mubr.f32.mxu0 0.0
    %v875 = vand.u32 %v127, 4294901760
    %876 = vmatmul.mubr.f32.gmra.mxu0 %v875
    %v877 = vpop.f32.mrf.mxu0
    %v878 = vadd.f32 %v763, %v877
    %v879 = vpop.f32.mrf.mxu0
    %880 = vmatprep.mubr.f32.mxu0 0.0
    %v881 = vand.u32 %v130, 4294901760
    %882 = vmatmul.mubr.f32.gmra.mxu0 %v881
    %v883 = vpop.f32.mrf.mxu0
    %v884 = vadd.f32 %v769, %v883
    %v885 = vpop.f32.mrf.mxu0
    %886 = vmatprep.mubr.f32.mxu0 0.0
    %v887 = vand.u32 %v133, 4294901760
    %888 = vmatmul.mubr.f32.gmra.mxu0 %v887
    %v889 = vpop.f32.mrf.mxu0
    %v890 = vadd.f32 %v775, %v889
    %v891 = vpop.f32.mrf.mxu0
    %892 = vmatprep.mubr.f32.mxu0 0.0
    %v893 = vand.u32 %v136, 4294901760
    %894 = vmatmul.mubr.f32.gmra.mxu0 %v893
    %v895 = vpop.f32.mrf.mxu0
    %v896 = vadd.f32 %v781, %v895
    %v897 = vpop.f32.mrf.mxu0
    %898 = vmatprep.mubr.f32.mxu0 0.0
    %v899 = vand.u32 %v139, 4294901760
    %900 = vmatmul.mubr.f32.gmra.mxu0 %v899
    %v901 = vpop.f32.mrf.mxu0
    %v902 = vadd.f32 %v787, %v901
    %v903 = vpop.f32.mrf.mxu0
    %904 = vdwg.mxu0
    %vm905 = vcmask 261120
    %v907 = vsel %vm905, %v94, 0
    %v910 = vsel %vm905, %v95, 0
    %v913 = vsel %vm905, %v96, 0
    %v916 = vsel %vm905, %v97, 0
    %v919 = vsel %vm905, %v98, 0
    %v922 = vsel %vm905, %v99, 0
    %v925 = vsel %vm905, %v100, 0
    %v928 = vsel %vm905, %v101, 0
    %930 = vmatprep.subr.mxu0 0.0
    %931 = vmatpush1.msra.mxu0 0.0
    %932 = vmatprep.subr.mxu0 0.0
    %933 = vmatpush1.msra.mxu0 0.0
    %934 = vmatprep.subr.mxu0 0.0
    %935 = vmatpush1.msra.mxu0 0.0
    %936 = vmatprep.subr.mxu0 0.0
    %937 = vmatpush1.msra.mxu0 0.0
    %938 = vmatprep.subr.mxu0 0.0
    %939 = vmatpush1.msra.mxu0 0.0
    %940 = vmatprep.subr.mxu0 0.0
    %941 = vmatpush1.msra.mxu0 0.0
    %942 = vmatprep.subr.mxu0 0.0
    %943 = vmatpush1.msra.mxu0 0.0
    %944 = vmatprep.subr.mxu0 0.0
    %945 = vmatpush1.msra.mxu0 0.0
    %946 = vmatprep.subr.mxu0 0.0
    %947 = vmatpush1.msra.mxu0 0.0
    %948 = vmatprep.subr.mxu0 0.0
    %949 = vmatpush1.msra.mxu0 0.0
    %950 = vmatprep.subr.mxu0 0.0
    %951 = vmatpush1.msra.mxu0 0.0
    %952 = vmatprep.subr.mxu0 0.0
    %953 = vmatpush1.msra.mxu0 0.0
    %954 = vmatprep.subr.mxu0 0.0
    %v955 = vand.u32 %v105, 4294901760
    %956 = vmatpush1.msra.mxu0 %v955
    %957 = vmatprep.subr.mxu0 0.0
    %v958 = vand.u32 %v104, 4294901760
    %959 = vmatpush1.msra.mxu0 %v958
    %960 = vmatprep.subr.mxu0 0.0
    %v961 = vand.u32 %v103, 4294901760
    %962 = vmatpush1.msra.mxu0 %v961
    %963 = vmatprep.subr.mxu0 0.0
    %v964 = vand.u32 %v102, 4294901760
    %965 = vmatpush1.msra.mxu0 %v964
    %966 = vmatprep.subr.mxu0 0.0
    %967 = vmatpush2.msra.mxu0 0.0
    %968 = vmatprep.subr.mxu0 0.0
    %969 = vmatpush2.msra.mxu0 0.0
    %970 = vmatprep.subr.mxu0 0.0
    %971 = vmatpush2.msra.mxu0 0.0
    %972 = vmatprep.subr.mxu0 0.0
    %973 = vmatpush2.msra.mxu0 0.0
    %974 = vmatprep.subr.mxu0 0.0
    %975 = vmatpush2.msra.mxu0 0.0
    %976 = vmatprep.subr.mxu0 0.0
    %977 = vmatpush2.msra.mxu0 0.0
    %978 = vmatprep.subr.mxu0 0.0
    %979 = vmatpush2.msra.mxu0 0.0
    %980 = vmatprep.subr.mxu0 0.0
    %981 = vmatpush2.msra.mxu0 0.0
    %982 = vmatprep.subr.mxu0 0.0
    %983 = vmatpush2.msra.mxu0 0.0
    %984 = vmatprep.subr.mxu0 0.0
    %985 = vmatpush2.msra.mxu0 0.0
    %986 = vmatprep.subr.mxu0 0.0
    %987 = vmatpush2.msra.mxu0 0.0
    %988 = vmatprep.subr.mxu0 0.0
    %989 = vmatpush2.msra.mxu0 0.0
    %990 = vmatprep.subr.mxu0 0.0
    %991 = vmatpush2.msra.mxu0 0.0
    %992 = vmatprep.subr.mxu0 0.0
    %993 = vmatpush2.msra.mxu0 0.0
    %994 = vmatprep.subr.mxu0 0.0
    %995 = vmatpush2.msra.mxu0 0.0
    %996 = vmatprep.subr.mxu0 0.0
    %997 = vmatpush2.msra.mxu0 0.0
    %998 = vmatprep.mubr.f32.mxu0 0.0
    %v999 = vand.u32 %v907, 4294901760
    %v1000 = vsub.f32 %v907, %v999
    %v1001 = vand.u32 %v1000, 4294901760
    %v1002 = vsub.f32 %v1000, %v1001
    %v1003 = vand.u32 %v1002, 4294901760
    %1004 = vmatmul.mubr.f32.gmra.mxu0 %v1003
    %v1005 = vpop.f32.mrf.mxu0
    %v1006 = vadd.f32 %v860, %v1005
    %v1007 = vpop.f32.mrf.mxu0
    %1008 = vmatprep.mubr.f32.mxu0 0.0
    %v1009 = vand.u32 %v910, 4294901760
    %v1010 = vsub.f32 %v910, %v1009
    %v1011 = vand.u32 %v1010, 4294901760
    %v1012 = vsub.f32 %v1010, %v1011
    %v1013 = vand.u32 %v1012, 4294901760
    %1014 = vmatmul.mubr.f32.gmra.mxu0 %v1013
    %v1015 = vpop.f32.mrf.mxu0
    %v1016 = vadd.f32 %v866, %v1015
    %v1017 = vpop.f32.mrf.mxu0
    %1018 = vmatprep.mubr.f32.mxu0 0.0
    %v1019 = vand.u32 %v913, 4294901760
    %v1020 = vsub.f32 %v913, %v1019
    %v1021 = vand.u32 %v1020, 4294901760
    %v1022 = vsub.f32 %v1020, %v1021
    %v1023 = vand.u32 %v1022, 4294901760
    %1024 = vmatmul.mubr.f32.gmra.mxu0 %v1023
    %v1025 = vpop.f32.mrf.mxu0
    %v1026 = vadd.f32 %v872, %v1025
    %v1027 = vpop.f32.mrf.mxu0
    %1028 = vmatprep.mubr.f32.mxu0 0.0
    %v1029 = vand.u32 %v916, 4294901760
    %v1030 = vsub.f32 %v916, %v1029
    %v1031 = vand.u32 %v1030, 4294901760
    %v1032 = vsub.f32 %v1030, %v1031
    %v1033 = vand.u32 %v1032, 4294901760
    %1034 = vmatmul.mubr.f32.gmra.mxu0 %v1033
    %v1035 = vpop.f32.mrf.mxu0
    %v1036 = vadd.f32 %v878, %v1035
    %v1037 = vpop.f32.mrf.mxu0
    %1038 = vmatprep.mubr.f32.mxu0 0.0
    %v1039 = vand.u32 %v919, 4294901760
    %v1040 = vsub.f32 %v919, %v1039
    %v1041 = vand.u32 %v1040, 4294901760
    %v1042 = vsub.f32 %v1040, %v1041
    %v1043 = vand.u32 %v1042, 4294901760
    %1044 = vmatmul.mubr.f32.gmra.mxu0 %v1043
    %v1045 = vpop.f32.mrf.mxu0
    %v1046 = vadd.f32 %v884, %v1045
    %v1047 = vpop.f32.mrf.mxu0
    %1048 = vmatprep.mubr.f32.mxu0 0.0
    %v1049 = vand.u32 %v922, 4294901760
    %v1050 = vsub.f32 %v922, %v1049
    %v1051 = vand.u32 %v1050, 4294901760
    %v1052 = vsub.f32 %v1050, %v1051
    %v1053 = vand.u32 %v1052, 4294901760
    %1054 = vmatmul.mubr.f32.gmra.mxu0 %v1053
    %v1055 = vpop.f32.mrf.mxu0
    %v1056 = vadd.f32 %v890, %v1055
    %v1057 = vpop.f32.mrf.mxu0
    %1058 = vmatprep.mubr.f32.mxu0 0.0
    %v1059 = vand.u32 %v925, 4294901760
    %v1060 = vsub.f32 %v925, %v1059
    %v1061 = vand.u32 %v1060, 4294901760
    %v1062 = vsub.f32 %v1060, %v1061
    %v1063 = vand.u32 %v1062, 4294901760
    %1064 = vmatmul.mubr.f32.gmra.mxu0 %v1063
    %v1065 = vpop.f32.mrf.mxu0
    %v1066 = vadd.f32 %v896, %v1065
    %v1067 = vpop.f32.mrf.mxu0
    %1068 = vmatprep.mubr.f32.mxu0 0.0
    %v1069 = vand.u32 %v928, 4294901760
    %v1070 = vsub.f32 %v928, %v1069
    %v1071 = vand.u32 %v1070, 4294901760
    %v1072 = vsub.f32 %v1070, %v1071
    %v1073 = vand.u32 %v1072, 4294901760
    %1074 = vmatmul.mubr.f32.gmra.mxu0 %v1073
    %v1075 = vpop.f32.mrf.mxu0
    %v1076 = vadd.f32 %v902, %v1075
    %v1077 = vpop.f32.mrf.mxu0
    %1078 = vdwg.mxu0
    %1079 = vmatprep.subr.mxu0 0.0
    %1080 = vmatpush1.msra.mxu0 0.0
    %1081 = vmatprep.subr.mxu0 0.0
    %1082 = vmatpush1.msra.mxu0 0.0
    %1083 = vmatprep.subr.mxu0 0.0
    %1084 = vmatpush1.msra.mxu0 0.0
    %1085 = vmatprep.subr.mxu0 0.0
    %1086 = vmatpush1.msra.mxu0 0.0
    %1087 = vmatprep.subr.mxu0 0.0
    %1088 = vmatpush1.msra.mxu0 0.0
    %1089 = vmatprep.subr.mxu0 0.0
    %1090 = vmatpush1.msra.mxu0 0.0
    %1091 = vmatprep.subr.mxu0 0.0
    %1092 = vmatpush1.msra.mxu0 0.0
    %1093 = vmatprep.subr.mxu0 0.0
    %1094 = vmatpush1.msra.mxu0 0.0
    %1095 = vmatprep.subr.mxu0 0.0
    %1096 = vmatpush1.msra.mxu0 0.0
    %1097 = vmatprep.subr.mxu0 0.0
    %1098 = vmatpush1.msra.mxu0 0.0
    %1099 = vmatprep.subr.mxu0 0.0
    %1100 = vmatpush1.msra.mxu0 0.0
    %1101 = vmatprep.subr.mxu0 0.0
    %1102 = vmatpush1.msra.mxu0 0.0
    %1103 = vmatprep.subr.mxu0 0.0
    %v1104 = vand.u32 %v105, 4294901760
    %v1105 = vsub.f32 %v105, %v1104
    %v1106 = vand.u32 %v1105, 4294901760
    %v1107 = vsub.f32 %v1105, %v1106
    %v1108 = vand.u32 %v1107, 4294901760
    %1109 = vmatpush1.msra.mxu0 %v1108
    %1110 = vmatprep.subr.mxu0 0.0
    %v1111 = vand.u32 %v104, 4294901760
    %v1112 = vsub.f32 %v104, %v1111
    %v1113 = vand.u32 %v1112, 4294901760
    %v1114 = vsub.f32 %v1112, %v1113
    %v1115 = vand.u32 %v1114, 4294901760
    %1116 = vmatpush1.msra.mxu0 %v1115
    %1117 = vmatprep.subr.mxu0 0.0
    %v1118 = vand.u32 %v103, 4294901760
    %v1119 = vsub.f32 %v103, %v1118
    %v1120 = vand.u32 %v1119, 4294901760
    %v1121 = vsub.f32 %v1119, %v1120
    %v1122 = vand.u32 %v1121, 4294901760
    %1123 = vmatpush1.msra.mxu0 %v1122
    %1124 = vmatprep.subr.mxu0 0.0
    %v1125 = vand.u32 %v102, 4294901760
    %v1126 = vsub.f32 %v102, %v1125
    %v1127 = vand.u32 %v1126, 4294901760
    %v1128 = vsub.f32 %v1126, %v1127
    %v1129 = vand.u32 %v1128, 4294901760
    %1130 = vmatpush1.msra.mxu0 %v1129
    %1131 = vmatprep.subr.mxu0 0.0
    %1132 = vmatpush2.msra.mxu0 0.0
    %1133 = vmatprep.subr.mxu0 0.0
    %1134 = vmatpush2.msra.mxu0 0.0
    %1135 = vmatprep.subr.mxu0 0.0
    %1136 = vmatpush2.msra.mxu0 0.0
    %1137 = vmatprep.subr.mxu0 0.0
    %1138 = vmatpush2.msra.mxu0 0.0
    %1139 = vmatprep.subr.mxu0 0.0
    %1140 = vmatpush2.msra.mxu0 0.0
    %1141 = vmatprep.subr.mxu0 0.0
    %1142 = vmatpush2.msra.mxu0 0.0
    %1143 = vmatprep.subr.mxu0 0.0
    %1144 = vmatpush2.msra.mxu0 0.0
    %1145 = vmatprep.subr.mxu0 0.0
    %1146 = vmatpush2.msra.mxu0 0.0
    %1147 = vmatprep.subr.mxu0 0.0
    %1148 = vmatpush2.msra.mxu0 0.0
    %1149 = vmatprep.subr.mxu0 0.0
    %1150 = vmatpush2.msra.mxu0 0.0
    %1151 = vmatprep.subr.mxu0 0.0
    %1152 = vmatpush2.msra.mxu0 0.0
    %1153 = vmatprep.subr.mxu0 0.0
    %1154 = vmatpush2.msra.mxu0 0.0
    %1155 = vmatprep.subr.mxu0 0.0
    %1156 = vmatpush2.msra.mxu0 0.0
    %1157 = vmatprep.subr.mxu0 0.0
    %1158 = vmatpush2.msra.mxu0 0.0
    %1159 = vmatprep.subr.mxu0 0.0
    %1160 = vmatpush2.msra.mxu0 0.0
    %1161 = vmatprep.subr.mxu0 0.0
    %1162 = vmatpush2.msra.mxu0 0.0
    %1163 = vmatprep.mubr.f32.mxu0 0.0
    %v1164 = vand.u32 %v907, 4294901760
    %1165 = vmatmul.mubr.f32.gmra.mxu0 %v1164
    %v1166 = vpop.f32.mrf.mxu0
    %v1167 = vadd.f32 %v1006, %v1166
    %v1168 = vpop.f32.mrf.mxu0
    %1169 = vmatprep.mubr.f32.mxu0 0.0
    %v1170 = vand.u32 %v910, 4294901760
    %1171 = vmatmul.mubr.f32.gmra.mxu0 %v1170
    %v1172 = vpop.f32.mrf.mxu0
    %v1173 = vadd.f32 %v1016, %v1172
    %v1174 = vpop.f32.mrf.mxu0
    %1175 = vmatprep.mubr.f32.mxu0 0.0
    %v1176 = vand.u32 %v913, 4294901760
    %1177 = vmatmul.mubr.f32.gmra.mxu0 %v1176
    %v1178 = vpop.f32.mrf.mxu0
    %v1179 = vadd.f32 %v1026, %v1178
    %v1180 = vpop.f32.mrf.mxu0
    %1181 = vmatprep.mubr.f32.mxu0 0.0
    %v1182 = vand.u32 %v916, 4294901760
    %1183 = vmatmul.mubr.f32.gmra.mxu0 %v1182
    %v1184 = vpop.f32.mrf.mxu0
    %v1185 = vadd.f32 %v1036, %v1184
    %v1186 = vpop.f32.mrf.mxu0
    %1187 = vmatprep.mubr.f32.mxu0 0.0
    %v1188 = vand.u32 %v919, 4294901760
    %1189 = vmatmul.mubr.f32.gmra.mxu0 %v1188
    %v1190 = vpop.f32.mrf.mxu0
    %v1191 = vadd.f32 %v1046, %v1190
    %v1192 = vpop.f32.mrf.mxu0
    %1193 = vmatprep.mubr.f32.mxu0 0.0
    %v1194 = vand.u32 %v922, 4294901760
    %1195 = vmatmul.mubr.f32.gmra.mxu0 %v1194
    %v1196 = vpop.f32.mrf.mxu0
    %v1197 = vadd.f32 %v1056, %v1196
    %v1198 = vpop.f32.mrf.mxu0
    %1199 = vmatprep.mubr.f32.mxu0 0.0
    %v1200 = vand.u32 %v925, 4294901760
    %1201 = vmatmul.mubr.f32.gmra.mxu0 %v1200
    %v1202 = vpop.f32.mrf.mxu0
    %v1203 = vadd.f32 %v1066, %v1202
    %v1204 = vpop.f32.mrf.mxu0
    %1205 = vmatprep.mubr.f32.mxu0 0.0
    %v1206 = vand.u32 %v928, 4294901760
    %1207 = vmatmul.mubr.f32.gmra.mxu0 %v1206
    %v1208 = vpop.f32.mrf.mxu0
    %v1209 = vadd.f32 %v1076, %v1208
    %v1210 = vpop.f32.mrf.mxu0
    %1211 = vdwg.mxu0
    %1212 = vmatprep.subr.mxu0 0.0
    %1213 = vmatpush1.msra.mxu0 0.0
    %1214 = vmatprep.subr.mxu0 0.0
    %1215 = vmatpush1.msra.mxu0 0.0
    %1216 = vmatprep.subr.mxu0 0.0
    %1217 = vmatpush1.msra.mxu0 0.0
    %1218 = vmatprep.subr.mxu0 0.0
    %1219 = vmatpush1.msra.mxu0 0.0
    %1220 = vmatprep.subr.mxu0 0.0
    %1221 = vmatpush1.msra.mxu0 0.0
    %1222 = vmatprep.subr.mxu0 0.0
    %1223 = vmatpush1.msra.mxu0 0.0
    %1224 = vmatprep.subr.mxu0 0.0
    %1225 = vmatpush1.msra.mxu0 0.0
    %1226 = vmatprep.subr.mxu0 0.0
    %1227 = vmatpush1.msra.mxu0 0.0
    %1228 = vmatprep.subr.mxu0 0.0
    %1229 = vmatpush1.msra.mxu0 0.0
    %1230 = vmatprep.subr.mxu0 0.0
    %1231 = vmatpush1.msra.mxu0 0.0
    %1232 = vmatprep.subr.mxu0 0.0
    %1233 = vmatpush1.msra.mxu0 0.0
    %1234 = vmatprep.subr.mxu0 0.0
    %1235 = vmatpush1.msra.mxu0 0.0
    %1236 = vmatprep.subr.mxu0 0.0
    %v1237 = vand.u32 %v105, 4294901760
    %v1238 = vsub.f32 %v105, %v1237
    %1239 = vmatpush1.msra.mxu0 %v1238
    %1240 = vmatprep.subr.mxu0 0.0
    %v1241 = vand.u32 %v104, 4294901760
    %v1242 = vsub.f32 %v104, %v1241
    %1243 = vmatpush1.msra.mxu0 %v1242
    %1244 = vmatprep.subr.mxu0 0.0
    %v1245 = vand.u32 %v103, 4294901760
    %v1246 = vsub.f32 %v103, %v1245
    %1247 = vmatpush1.msra.mxu0 %v1246
    %1248 = vmatprep.subr.mxu0 0.0
    %v1249 = vand.u32 %v102, 4294901760
    %v1250 = vsub.f32 %v102, %v1249
    %1251 = vmatpush1.msra.mxu0 %v1250
    %1252 = vmatprep.subr.mxu0 0.0
    %1253 = vmatpush2.msra.mxu0 0.0
    %1254 = vmatprep.subr.mxu0 0.0
    %1255 = vmatpush2.msra.mxu0 0.0
    %1256 = vmatprep.subr.mxu0 0.0
    %1257 = vmatpush2.msra.mxu0 0.0
    %1258 = vmatprep.subr.mxu0 0.0
    %1259 = vmatpush2.msra.mxu0 0.0
    %1260 = vmatprep.subr.mxu0 0.0
    %1261 = vmatpush2.msra.mxu0 0.0
    %1262 = vmatprep.subr.mxu0 0.0
    %1263 = vmatpush2.msra.mxu0 0.0
    %1264 = vmatprep.subr.mxu0 0.0
    %1265 = vmatpush2.msra.mxu0 0.0
    %1266 = vmatprep.subr.mxu0 0.0
    %1267 = vmatpush2.msra.mxu0 0.0
    %1268 = vmatprep.subr.mxu0 0.0
    %1269 = vmatpush2.msra.mxu0 0.0
    %1270 = vmatprep.subr.mxu0 0.0
    %1271 = vmatpush2.msra.mxu0 0.0
    %1272 = vmatprep.subr.mxu0 0.0
    %1273 = vmatpush2.msra.mxu0 0.0
    %1274 = vmatprep.subr.mxu0 0.0
    %1275 = vmatpush2.msra.mxu0 0.0
    %1276 = vmatprep.subr.mxu0 0.0
    %1277 = vmatpush2.msra.mxu0 0.0
    %1278 = vmatprep.subr.mxu0 0.0
    %1279 = vmatpush2.msra.mxu0 0.0
    %1280 = vmatprep.subr.mxu0 0.0
    %1281 = vmatpush2.msra.mxu0 0.0
    %1282 = vmatprep.subr.mxu0 0.0
    %1283 = vmatpush2.msra.mxu0 0.0
    %1284 = vmatprep.mubr.f32.mxu0 0.0
    %v1285 = vand.u32 %v907, 4294901760
    %v1286 = vsub.f32 %v907, %v1285
    %1287 = vmatmul.mubr.f32.gmra.mxu0 %v1286
    %v1288 = vpop.f32.mrf.mxu0
    %v1289 = vadd.f32 %v1167, %v1288
    %v1290 = vpop.f32.mrf.mxu0
    %1291 = vmatprep.mubr.f32.mxu0 0.0
    %v1292 = vand.u32 %v910, 4294901760
    %v1293 = vsub.f32 %v910, %v1292
    %1294 = vmatmul.mubr.f32.gmra.mxu0 %v1293
    %v1295 = vpop.f32.mrf.mxu0
    %v1296 = vadd.f32 %v1173, %v1295
    %v1297 = vpop.f32.mrf.mxu0
    %1298 = vmatprep.mubr.f32.mxu0 0.0
    %v1299 = vand.u32 %v913, 4294901760
    %v1300 = vsub.f32 %v913, %v1299
    %1301 = vmatmul.mubr.f32.gmra.mxu0 %v1300
    %v1302 = vpop.f32.mrf.mxu0
    %v1303 = vadd.f32 %v1179, %v1302
    %v1304 = vpop.f32.mrf.mxu0
    %1305 = vmatprep.mubr.f32.mxu0 0.0
    %v1306 = vand.u32 %v916, 4294901760
    %v1307 = vsub.f32 %v916, %v1306
    %1308 = vmatmul.mubr.f32.gmra.mxu0 %v1307
    %v1309 = vpop.f32.mrf.mxu0
    %v1310 = vadd.f32 %v1185, %v1309
    %v1311 = vpop.f32.mrf.mxu0
    %1312 = vmatprep.mubr.f32.mxu0 0.0
    %v1313 = vand.u32 %v919, 4294901760
    %v1314 = vsub.f32 %v919, %v1313
    %1315 = vmatmul.mubr.f32.gmra.mxu0 %v1314
    %v1316 = vpop.f32.mrf.mxu0
    %v1317 = vadd.f32 %v1191, %v1316
    %v1318 = vpop.f32.mrf.mxu0
    %1319 = vmatprep.mubr.f32.mxu0 0.0
    %v1320 = vand.u32 %v922, 4294901760
    %v1321 = vsub.f32 %v922, %v1320
    %1322 = vmatmul.mubr.f32.gmra.mxu0 %v1321
    %v1323 = vpop.f32.mrf.mxu0
    %v1324 = vadd.f32 %v1197, %v1323
    %v1325 = vpop.f32.mrf.mxu0
    %1326 = vmatprep.mubr.f32.mxu0 0.0
    %v1327 = vand.u32 %v925, 4294901760
    %v1328 = vsub.f32 %v925, %v1327
    %1329 = vmatmul.mubr.f32.gmra.mxu0 %v1328
    %v1330 = vpop.f32.mrf.mxu0
    %v1331 = vadd.f32 %v1203, %v1330
    %v1332 = vpop.f32.mrf.mxu0
    %1333 = vmatprep.mubr.f32.mxu0 0.0
    %v1334 = vand.u32 %v928, 4294901760
    %v1335 = vsub.f32 %v928, %v1334
    %1336 = vmatmul.mubr.f32.gmra.mxu0 %v1335
    %v1337 = vpop.f32.mrf.mxu0
    %v1338 = vadd.f32 %v1209, %v1337
    %v1339 = vpop.f32.mrf.mxu0
    %1340 = vdwg.mxu0
    %1341 = vmatprep.subr.mxu0 0.0
    %1342 = vmatpush1.msra.mxu0 0.0
    %1343 = vmatprep.subr.mxu0 0.0
    %1344 = vmatpush1.msra.mxu0 0.0
    %1345 = vmatprep.subr.mxu0 0.0
    %1346 = vmatpush1.msra.mxu0 0.0
    %1347 = vmatprep.subr.mxu0 0.0
    %1348 = vmatpush1.msra.mxu0 0.0
    %1349 = vmatprep.subr.mxu0 0.0
    %1350 = vmatpush1.msra.mxu0 0.0
    %1351 = vmatprep.subr.mxu0 0.0
    %1352 = vmatpush1.msra.mxu0 0.0
    %1353 = vmatprep.subr.mxu0 0.0
    %1354 = vmatpush1.msra.mxu0 0.0
    %1355 = vmatprep.subr.mxu0 0.0
    %1356 = vmatpush1.msra.mxu0 0.0
    %1357 = vmatprep.subr.mxu0 0.0
    %1358 = vmatpush1.msra.mxu0 0.0
    %1359 = vmatprep.subr.mxu0 0.0
    %1360 = vmatpush1.msra.mxu0 0.0
    %1361 = vmatprep.subr.mxu0 0.0
    %1362 = vmatpush1.msra.mxu0 0.0
    %1363 = vmatprep.subr.mxu0 0.0
    %1364 = vmatpush1.msra.mxu0 0.0
    %1365 = vmatprep.subr.mxu0 0.0
    %v1366 = vand.u32 %v105, 4294901760
    %1367 = vmatpush1.msra.mxu0 %v1366
    %1368 = vmatprep.subr.mxu0 0.0
    %v1369 = vand.u32 %v104, 4294901760
    %1370 = vmatpush1.msra.mxu0 %v1369
    %1371 = vmatprep.subr.mxu0 0.0
    %v1372 = vand.u32 %v103, 4294901760
    %1373 = vmatpush1.msra.mxu0 %v1372
    %1374 = vmatprep.subr.mxu0 0.0
    %v1375 = vand.u32 %v102, 4294901760
    %1376 = vmatpush1.msra.mxu0 %v1375
    %1377 = vmatprep.subr.mxu0 0.0
    %1378 = vmatpush2.msra.mxu0 0.0
    %1379 = vmatprep.subr.mxu0 0.0
    %1380 = vmatpush2.msra.mxu0 0.0
    %1381 = vmatprep.subr.mxu0 0.0
    %1382 = vmatpush2.msra.mxu0 0.0
    %1383 = vmatprep.subr.mxu0 0.0
    %1384 = vmatpush2.msra.mxu0 0.0
    %1385 = vmatprep.subr.mxu0 0.0
    %1386 = vmatpush2.msra.mxu0 0.0
    %1387 = vmatprep.subr.mxu0 0.0
    %1388 = vmatpush2.msra.mxu0 0.0
    %1389 = vmatprep.subr.mxu0 0.0
    %1390 = vmatpush2.msra.mxu0 0.0
    %1391 = vmatprep.subr.mxu0 0.0
    %1392 = vmatpush2.msra.mxu0 0.0
    %1393 = vmatprep.subr.mxu0 0.0
    %1394 = vmatpush2.msra.mxu0 0.0
    %1395 = vmatprep.subr.mxu0 0.0
    %1396 = vmatpush2.msra.mxu0 0.0
    %1397 = vmatprep.subr.mxu0 0.0
    %1398 = vmatpush2.msra.mxu0 0.0
    %1399 = vmatprep.subr.mxu0 0.0
    %1400 = vmatpush2.msra.mxu0 0.0
    %1401 = vmatprep.subr.mxu0 0.0
    %1402 = vmatpush2.msra.mxu0 0.0
    %1403 = vmatprep.subr.mxu0 0.0
    %1404 = vmatpush2.msra.mxu0 0.0
    %1405 = vmatprep.subr.mxu0 0.0
    %1406 = vmatpush2.msra.mxu0 0.0
    %1407 = vmatprep.subr.mxu0 0.0
    %1408 = vmatpush2.msra.mxu0 0.0
    %1409 = vmatprep.mubr.f32.mxu0 0.0
    %v1410 = vand.u32 %v907, 4294901760
    %v1411 = vsub.f32 %v907, %v1410
    %v1412 = vand.u32 %v1411, 4294901760
    %1413 = vmatmul.mubr.f32.gmra.mxu0 %v1412
    %v1414 = vpop.f32.mrf.mxu0
    %v1415 = vadd.f32 %v1289, %v1414
    %v1416 = vpop.f32.mrf.mxu0
    %1417 = vmatprep.mubr.f32.mxu0 0.0
    %v1418 = vand.u32 %v910, 4294901760
    %v1419 = vsub.f32 %v910, %v1418
    %v1420 = vand.u32 %v1419, 4294901760
    %1421 = vmatmul.mubr.f32.gmra.mxu0 %v1420
    %v1422 = vpop.f32.mrf.mxu0
    %v1423 = vadd.f32 %v1296, %v1422
    %v1424 = vpop.f32.mrf.mxu0
    %1425 = vmatprep.mubr.f32.mxu0 0.0
    %v1426 = vand.u32 %v913, 4294901760
    %v1427 = vsub.f32 %v913, %v1426
    %v1428 = vand.u32 %v1427, 4294901760
    %1429 = vmatmul.mubr.f32.gmra.mxu0 %v1428
    %v1430 = vpop.f32.mrf.mxu0
    %v1431 = vadd.f32 %v1303, %v1430
    %v1432 = vpop.f32.mrf.mxu0
    %1433 = vmatprep.mubr.f32.mxu0 0.0
    %v1434 = vand.u32 %v916, 4294901760
    %v1435 = vsub.f32 %v916, %v1434
    %v1436 = vand.u32 %v1435, 4294901760
    %1437 = vmatmul.mubr.f32.gmra.mxu0 %v1436
    %v1438 = vpop.f32.mrf.mxu0
    %v1439 = vadd.f32 %v1310, %v1438
    %v1440 = vpop.f32.mrf.mxu0
    %1441 = vmatprep.mubr.f32.mxu0 0.0
    %v1442 = vand.u32 %v919, 4294901760
    %v1443 = vsub.f32 %v919, %v1442
    %v1444 = vand.u32 %v1443, 4294901760
    %1445 = vmatmul.mubr.f32.gmra.mxu0 %v1444
    %v1446 = vpop.f32.mrf.mxu0
    %v1447 = vadd.f32 %v1317, %v1446
    %v1448 = vpop.f32.mrf.mxu0
    %1449 = vmatprep.mubr.f32.mxu0 0.0
    %v1450 = vand.u32 %v922, 4294901760
    %v1451 = vsub.f32 %v922, %v1450
    %v1452 = vand.u32 %v1451, 4294901760
    %1453 = vmatmul.mubr.f32.gmra.mxu0 %v1452
    %v1454 = vpop.f32.mrf.mxu0
    %v1455 = vadd.f32 %v1324, %v1454
    %v1456 = vpop.f32.mrf.mxu0
    %1457 = vmatprep.mubr.f32.mxu0 0.0
    %v1458 = vand.u32 %v925, 4294901760
    %v1459 = vsub.f32 %v925, %v1458
    %v1460 = vand.u32 %v1459, 4294901760
    %1461 = vmatmul.mubr.f32.gmra.mxu0 %v1460
    %v1462 = vpop.f32.mrf.mxu0
    %v1463 = vadd.f32 %v1331, %v1462
    %v1464 = vpop.f32.mrf.mxu0
    %1465 = vmatprep.mubr.f32.mxu0 0.0
    %v1466 = vand.u32 %v928, 4294901760
    %v1467 = vsub.f32 %v928, %v1466
    %v1468 = vand.u32 %v1467, 4294901760
    %1469 = vmatmul.mubr.f32.gmra.mxu0 %v1468
    %v1470 = vpop.f32.mrf.mxu0
    %v1471 = vadd.f32 %v1338, %v1470
    %v1472 = vpop.f32.mrf.mxu0
    %1473 = vdwg.mxu0
    %1474 = vmatprep.subr.mxu0 0.0
    %1475 = vmatpush1.msra.mxu0 0.0
    %1476 = vmatprep.subr.mxu0 0.0
    %1477 = vmatpush1.msra.mxu0 0.0
    %1478 = vmatprep.subr.mxu0 0.0
    %1479 = vmatpush1.msra.mxu0 0.0
    %1480 = vmatprep.subr.mxu0 0.0
    %1481 = vmatpush1.msra.mxu0 0.0
    %1482 = vmatprep.subr.mxu0 0.0
    %1483 = vmatpush1.msra.mxu0 0.0
    %1484 = vmatprep.subr.mxu0 0.0
    %1485 = vmatpush1.msra.mxu0 0.0
    %1486 = vmatprep.subr.mxu0 0.0
    %1487 = vmatpush1.msra.mxu0 0.0
    %1488 = vmatprep.subr.mxu0 0.0
    %1489 = vmatpush1.msra.mxu0 0.0
    %1490 = vmatprep.subr.mxu0 0.0
    %1491 = vmatpush1.msra.mxu0 0.0
    %1492 = vmatprep.subr.mxu0 0.0
    %1493 = vmatpush1.msra.mxu0 0.0
    %1494 = vmatprep.subr.mxu0 0.0
    %1495 = vmatpush1.msra.mxu0 0.0
    %1496 = vmatprep.subr.mxu0 0.0
    %1497 = vmatpush1.msra.mxu0 0.0
    %1498 = vmatprep.subr.mxu0 0.0
    %v1499 = vand.u32 %v105, 4294901760
    %v1500 = vsub.f32 %v105, %v1499
    %v1501 = vand.u32 %v1500, 4294901760
    %1502 = vmatpush1.msra.mxu0 %v1501
    %1503 = vmatprep.subr.mxu0 0.0
    %v1504 = vand.u32 %v104, 4294901760
    %v1505 = vsub.f32 %v104, %v1504
    %v1506 = vand.u32 %v1505, 4294901760
    %1507 = vmatpush1.msra.mxu0 %v1506
    %1508 = vmatprep.subr.mxu0 0.0
    %v1509 = vand.u32 %v103, 4294901760
    %v1510 = vsub.f32 %v103, %v1509
    %v1511 = vand.u32 %v1510, 4294901760
    %1512 = vmatpush1.msra.mxu0 %v1511
    %1513 = vmatprep.subr.mxu0 0.0
    %v1514 = vand.u32 %v102, 4294901760
    %v1515 = vsub.f32 %v102, %v1514
    %v1516 = vand.u32 %v1515, 4294901760
    %1517 = vmatpush1.msra.mxu0 %v1516
    %1518 = vmatprep.subr.mxu0 0.0
    %1519 = vmatpush2.msra.mxu0 0.0
    %1520 = vmatprep.subr.mxu0 0.0
    %1521 = vmatpush2.msra.mxu0 0.0
    %1522 = vmatprep.subr.mxu0 0.0
    %1523 = vmatpush2.msra.mxu0 0.0
    %1524 = vmatprep.subr.mxu0 0.0
    %1525 = vmatpush2.msra.mxu0 0.0
    %1526 = vmatprep.subr.mxu0 0.0
    %1527 = vmatpush2.msra.mxu0 0.0
    %1528 = vmatprep.subr.mxu0 0.0
    %1529 = vmatpush2.msra.mxu0 0.0
    %1530 = vmatprep.subr.mxu0 0.0
    %1531 = vmatpush2.msra.mxu0 0.0
    %1532 = vmatprep.subr.mxu0 0.0
    %1533 = vmatpush2.msra.mxu0 0.0
    %1534 = vmatprep.subr.mxu0 0.0
    %1535 = vmatpush2.msra.mxu0 0.0
    %1536 = vmatprep.subr.mxu0 0.0
    %1537 = vmatpush2.msra.mxu0 0.0
    %1538 = vmatprep.subr.mxu0 0.0
    %1539 = vmatpush2.msra.mxu0 0.0
    %1540 = vmatprep.subr.mxu0 0.0
    %1541 = vmatpush2.msra.mxu0 0.0
    %1542 = vmatprep.subr.mxu0 0.0
    %1543 = vmatpush2.msra.mxu0 0.0
    %1544 = vmatprep.subr.mxu0 0.0
    %1545 = vmatpush2.msra.mxu0 0.0
    %1546 = vmatprep.subr.mxu0 0.0
    %1547 = vmatpush2.msra.mxu0 0.0
    %1548 = vmatprep.subr.mxu0 0.0
    %1549 = vmatpush2.msra.mxu0 0.0
    %1550 = vmatprep.mubr.f32.mxu0 0.0
    %v1551 = vand.u32 %v907, 4294901760
    %1552 = vmatmul.mubr.f32.gmra.mxu0 %v1551
    %v1553 = vpop.f32.mrf.mxu0
    %v1554 = vadd.f32 %v1415, %v1553
    %v1555 = vpop.f32.mrf.mxu0
    %1556 = vmatprep.mubr.f32.mxu0 0.0
    %v1557 = vand.u32 %v910, 4294901760
    %1558 = vmatmul.mubr.f32.gmra.mxu0 %v1557
    %v1559 = vpop.f32.mrf.mxu0
    %v1560 = vadd.f32 %v1423, %v1559
    %v1561 = vpop.f32.mrf.mxu0
    %1562 = vmatprep.mubr.f32.mxu0 0.0
    %v1563 = vand.u32 %v913, 4294901760
    %1564 = vmatmul.mubr.f32.gmra.mxu0 %v1563
    %v1565 = vpop.f32.mrf.mxu0
    %v1566 = vadd.f32 %v1431, %v1565
    %v1567 = vpop.f32.mrf.mxu0
    %1568 = vmatprep.mubr.f32.mxu0 0.0
    %v1569 = vand.u32 %v916, 4294901760
    %1570 = vmatmul.mubr.f32.gmra.mxu0 %v1569
    %v1571 = vpop.f32.mrf.mxu0
    %v1572 = vadd.f32 %v1439, %v1571
    %v1573 = vpop.f32.mrf.mxu0
    %1574 = vmatprep.mubr.f32.mxu0 0.0
    %v1575 = vand.u32 %v919, 4294901760
    %1576 = vmatmul.mubr.f32.gmra.mxu0 %v1575
    %v1577 = vpop.f32.mrf.mxu0
    %v1578 = vadd.f32 %v1447, %v1577
    %v1579 = vpop.f32.mrf.mxu0
    %1580 = vmatprep.mubr.f32.mxu0 0.0
    %v1581 = vand.u32 %v922, 4294901760
    %1582 = vmatmul.mubr.f32.gmra.mxu0 %v1581
    %v1583 = vpop.f32.mrf.mxu0
    %v1584 = vadd.f32 %v1455, %v1583
    %v1585 = vpop.f32.mrf.mxu0
    %1586 = vmatprep.mubr.f32.mxu0 0.0
    %v1587 = vand.u32 %v925, 4294901760
    %1588 = vmatmul.mubr.f32.gmra.mxu0 %v1587
    %v1589 = vpop.f32.mrf.mxu0
    %v1590 = vadd.f32 %v1463, %v1589
    %v1591 = vpop.f32.mrf.mxu0
    %1592 = vmatprep.mubr.f32.mxu0 0.0
    %v1593 = vand.u32 %v928, 4294901760
    %1594 = vmatmul.mubr.f32.gmra.mxu0 %v1593
    %v1595 = vpop.f32.mrf.mxu0
    %v1596 = vadd.f32 %v1471, %v1595
    %v1597 = vpop.f32.mrf.mxu0
    %1598 = vdwg.mxu0
    %1599 = vmatprep.subr.mxu0 0.0
    %1600 = vmatpush1.msra.mxu0 0.0
    %1601 = vmatprep.subr.mxu0 0.0
    %1602 = vmatpush1.msra.mxu0 0.0
    %1603 = vmatprep.subr.mxu0 0.0
    %1604 = vmatpush1.msra.mxu0 0.0
    %1605 = vmatprep.subr.mxu0 0.0
    %1606 = vmatpush1.msra.mxu0 0.0
    %1607 = vmatprep.subr.mxu0 0.0
    %1608 = vmatpush1.msra.mxu0 0.0
    %1609 = vmatprep.subr.mxu0 0.0
    %1610 = vmatpush1.msra.mxu0 0.0
    %1611 = vmatprep.subr.mxu0 0.0
    %1612 = vmatpush1.msra.mxu0 0.0
    %1613 = vmatprep.subr.mxu0 0.0
    %1614 = vmatpush1.msra.mxu0 0.0
    %1615 = vmatprep.subr.mxu0 0.0
    %1616 = vmatpush1.msra.mxu0 0.0
    %1617 = vmatprep.subr.mxu0 0.0
    %1618 = vmatpush1.msra.mxu0 0.0
    %1619 = vmatprep.subr.mxu0 0.0
    %1620 = vmatpush1.msra.mxu0 0.0
    %1621 = vmatprep.subr.mxu0 0.0
    %1622 = vmatpush1.msra.mxu0 0.0
    %1623 = vmatprep.subr.mxu0 0.0
    %v1624 = vand.u32 %v105, 4294901760
    %1625 = vmatpush1.msra.mxu0 %v1624
    %1626 = vmatprep.subr.mxu0 0.0
    %v1627 = vand.u32 %v104, 4294901760
    %1628 = vmatpush1.msra.mxu0 %v1627
    %1629 = vmatprep.subr.mxu0 0.0
    %v1630 = vand.u32 %v103, 4294901760
    %1631 = vmatpush1.msra.mxu0 %v1630
    %1632 = vmatprep.subr.mxu0 0.0
    %v1633 = vand.u32 %v102, 4294901760
    %1634 = vmatpush1.msra.mxu0 %v1633
    %1635 = vmatprep.subr.mxu0 0.0
    %1636 = vmatpush2.msra.mxu0 0.0
    %1637 = vmatprep.subr.mxu0 0.0
    %1638 = vmatpush2.msra.mxu0 0.0
    %1639 = vmatprep.subr.mxu0 0.0
    %1640 = vmatpush2.msra.mxu0 0.0
    %1641 = vmatprep.subr.mxu0 0.0
    %1642 = vmatpush2.msra.mxu0 0.0
    %1643 = vmatprep.subr.mxu0 0.0
    %1644 = vmatpush2.msra.mxu0 0.0
    %1645 = vmatprep.subr.mxu0 0.0
    %1646 = vmatpush2.msra.mxu0 0.0
    %1647 = vmatprep.subr.mxu0 0.0
    %1648 = vmatpush2.msra.mxu0 0.0
    %1649 = vmatprep.subr.mxu0 0.0
    %1650 = vmatpush2.msra.mxu0 0.0
    %1651 = vmatprep.subr.mxu0 0.0
    %1652 = vmatpush2.msra.mxu0 0.0
    %1653 = vmatprep.subr.mxu0 0.0
    %1654 = vmatpush2.msra.mxu0 0.0
    %1655 = vmatprep.subr.mxu0 0.0
    %1656 = vmatpush2.msra.mxu0 0.0
    %1657 = vmatprep.subr.mxu0 0.0
    %1658 = vmatpush2.msra.mxu0 0.0
    %1659 = vmatprep.subr.mxu0 0.0
    %1660 = vmatpush2.msra.mxu0 0.0
    %1661 = vmatprep.subr.mxu0 0.0
    %1662 = vmatpush2.msra.mxu0 0.0
    %1663 = vmatprep.subr.mxu0 0.0
    %1664 = vmatpush2.msra.mxu0 0.0
    %1665 = vmatprep.subr.mxu0 0.0
    %1666 = vmatpush2.msra.mxu0 0.0
    %1667 = vmatprep.mubr.f32.mxu0 0.0
    %v1668 = vand.u32 %v907, 4294901760
    %1669 = vmatmul.mubr.f32.gmra.mxu0 %v1668
    %v1670 = vpop.f32.mrf.mxu0
    %v1671 = vadd.f32 %v1554, %v1670
    %v1672 = vpop.f32.mrf.mxu0
    %1673 = vmatprep.mubr.f32.mxu0 0.0
    %v1674 = vand.u32 %v910, 4294901760
    %1675 = vmatmul.mubr.f32.gmra.mxu0 %v1674
    %v1676 = vpop.f32.mrf.mxu0
    %v1677 = vadd.f32 %v1560, %v1676
    %v1678 = vpop.f32.mrf.mxu0
    %1679 = vmatprep.mubr.f32.mxu0 0.0
    %v1680 = vand.u32 %v913, 4294901760
    %1681 = vmatmul.mubr.f32.gmra.mxu0 %v1680
    %v1682 = vpop.f32.mrf.mxu0
    %v1683 = vadd.f32 %v1566, %v1682
    %v1684 = vpop.f32.mrf.mxu0
    %1685 = vmatprep.mubr.f32.mxu0 0.0
    %v1686 = vand.u32 %v916, 4294901760
    %1687 = vmatmul.mubr.f32.gmra.mxu0 %v1686
    %v1688 = vpop.f32.mrf.mxu0
    %v1689 = vadd.f32 %v1572, %v1688
    %v1690 = vpop.f32.mrf.mxu0
    %1691 = vmatprep.mubr.f32.mxu0 0.0
    %v1692 = vand.u32 %v919, 4294901760
    %1693 = vmatmul.mubr.f32.gmra.mxu0 %v1692
    %v1694 = vpop.f32.mrf.mxu0
    %v1695 = vadd.f32 %v1578, %v1694
    %v1696 = vpop.f32.mrf.mxu0
    %1697 = vmatprep.mubr.f32.mxu0 0.0
    %v1698 = vand.u32 %v922, 4294901760
    %1699 = vmatmul.mubr.f32.gmra.mxu0 %v1698
    %v1700 = vpop.f32.mrf.mxu0
    %v1701 = vadd.f32 %v1584, %v1700
    %v1702 = vpop.f32.mrf.mxu0
    %1703 = vmatprep.mubr.f32.mxu0 0.0
    %v1704 = vand.u32 %v925, 4294901760
    %1705 = vmatmul.mubr.f32.gmra.mxu0 %v1704
    %v1706 = vpop.f32.mrf.mxu0
    %v1707 = vadd.f32 %v1590, %v1706
    %v1708 = vpop.f32.mrf.mxu0
    %1709 = vmatprep.mubr.f32.mxu0 0.0
    %v1710 = vand.u32 %v928, 4294901760
    %1711 = vmatmul.mubr.f32.gmra.mxu0 %v1710
    %v1712 = vpop.f32.mrf.mxu0
    %v1713 = vadd.f32 %v1596, %v1712
    %v1714 = vpop.f32.mrf.mxu0
    %1715 = vdwg.mxu0
    %v1716 = vld [vmem:[%s4] sm:$0x1]
    %v1718 = vlaneseq
    %v1719 = vshrl.u32 %v1718, 7
    %v1720 = vsub.s32 0, %v1719
    %v1721 = vrot.slane %v1716, %v1720
    %v1723 = vadd.f32 %v1671, %v1721
    %v1724 = vadd.f32 %v1677, %v1721
    %v1725 = vadd.f32 %v1683, %v1721
    %v1726 = vadd.f32 %v1689, %v1721
    %v1727 = vadd.f32 %v1695, %v1721
    %v1728 = vadd.f32 %v1701, %v1721
    %v1729 = vadd.f32 %v1707, %v1721
    %v1730 = vadd.f32 %v1713, %v1721
    %v1731 = vmax.f32 %v1723, 0.0
    %v1732 = vmax.f32 %v1724, 0.0
    %v1733 = vmax.f32 %v1725, 0.0
    %v1734 = vmax.f32 %v1726, 0.0
    %v1735 = vmax.f32 %v1727, 0.0
    %v1736 = vmax.f32 %v1728, 0.0
    %v1737 = vmax.f32 %v1729, 0.0
    %v1738 = vmax.f32 %v1730, 0.0
    %v1739 = vld [vmem:[#allocation9] sm:$0xff]
    %v1740 = vld [vmem:[#allocation9 + $0x8] sm:$0xff]
    %v1741 = vld [vmem:[#allocation9 + $0x10] sm:$0xff]
    %v1742 = vld [vmem:[#allocation9 + $0x18] sm:$0xff]
    %v1743 = vld [vmem:[#allocation9 + $0x20] sm:$0xff]
    %v1744 = vld [vmem:[#allocation9 + $0x28] sm:$0xff]
    %v1745 = vld [vmem:[#allocation9 + $0x30] sm:$0xff]
    %v1746 = vld [vmem:[#allocation9 + $0x38] sm:$0xff]
    %v1747 = vld [vmem:[#allocation9 + $0x40] sm:$0xff]
    %v1748 = vld [vmem:[#allocation9 + $0x48] sm:$0xff]
    %v1749 = vld [vmem:[#allocation9 + $0x50] sm:$0xff]
    %v1750 = vld [vmem:[#allocation9 + $0x58] sm:$0xff]
    %v1751 = vld [vmem:[#allocation9 + $0x60] sm:$0xff]
    %v1752 = vld [vmem:[#allocation9 + $0x68] sm:$0xff]
    %v1753 = vld [vmem:[#allocation9 + $0x70] sm:$0xff]
    %v1754 = vld [vmem:[#allocation9 + $0x78] sm:$0xff]
    %v1755 = vld [vmem:[%s6] sm:$0x3]
    %v1757 = vlaneseq
    %v1758 = vshrl.u32 %v1757, 7
    %v1759 = vsub.s32 0, %v1758
    %v1760 = vrot.slane %v1755, %v1759
    %v1761 = vlaneseq
    %v1762 = vshrl.u32 %v1761, 7
    %v1763 = vsub.s32 1, %v1762
    %v1764 = vrot.slane %v1755, %v1763
    %vm1767 = vcmask 523264
    %v1769 = vsel %vm1767, %v1731, 0
    %v1772 = vsel %vm1767, %v1732, 0
    %v1775 = vsel %vm1767, %v1733, 0
    %v1778 = vsel %vm1767, %v1734, 0
    %v1781 = vsel %vm1767, %v1735, 0
    %v1784 = vsel %vm1767, %v1736, 0
    %v1787 = vsel %vm1767, %v1737, 0
    %v1790 = vsel %vm1767, %v1738, 0
    %1792 = vmatprep.subr.mxu0 0.0
    %1793 = vmatpush1.msra.mxu0 0.0
    %1794 = vmatprep.subr.mxu0 0.0
    %1795 = vmatpush1.msra.mxu0 0.0
    %1796 = vmatprep.subr.mxu0 0.0
    %1797 = vmatpush1.msra.mxu0 0.0
    %1798 = vmatprep.subr.mxu0 0.0
    %1799 = vmatpush1.msra.mxu0 0.0
    %1800 = vmatprep.subr.mxu0 0.0
    %1801 = vmatpush1.msra.mxu0 0.0
    %1802 = vmatprep.subr.mxu0 0.0
    %1803 = vmatpush1.msra.mxu0 0.0
    %1804 = vmatprep.subr.mxu0 0.0
    %1805 = vmatpush1.msra.mxu0 0.0
    %1806 = vmatprep.subr.mxu0 0.0
    %1807 = vmatpush1.msra.mxu0 0.0
    %v1808 = vand.u32 %v1754, 4294901760
    %1809 = vmatprep.subr.mxu0 %v1808
    %v1810 = vand.u32 %v1753, 4294901760
    %1811 = vmatpush1.msra.mxu0 %v1810
    %v1812 = vand.u32 %v1752, 4294901760
    %1813 = vmatprep.subr.mxu0 %v1812
    %v1814 = vand.u32 %v1751, 4294901760
    %1815 = vmatpush1.msra.mxu0 %v1814
    %v1816 = vand.u32 %v1750, 4294901760
    %1817 = vmatprep.subr.mxu0 %v1816
    %v1818 = vand.u32 %v1749, 4294901760
    %1819 = vmatpush1.msra.mxu0 %v1818
    %v1820 = vand.u32 %v1748, 4294901760
    %1821 = vmatprep.subr.mxu0 %v1820
    %v1822 = vand.u32 %v1747, 4294901760
    %1823 = vmatpush1.msra.mxu0 %v1822
    %v1824 = vand.u32 %v1746, 4294901760
    %1825 = vmatprep.subr.mxu0 %v1824
    %v1826 = vand.u32 %v1745, 4294901760
    %1827 = vmatpush1.msra.mxu0 %v1826
    %v1828 = vand.u32 %v1744, 4294901760
    %1829 = vmatprep.subr.mxu0 %v1828
    %v1830 = vand.u32 %v1743, 4294901760
    %1831 = vmatpush1.msra.mxu0 %v1830
    %v1832 = vand.u32 %v1742, 4294901760
    %1833 = vmatprep.subr.mxu0 %v1832
    %v1834 = vand.u32 %v1741, 4294901760
    %1835 = vmatpush1.msra.mxu0 %v1834
    %v1836 = vand.u32 %v1740, 4294901760
    %1837 = vmatprep.subr.mxu0 %v1836
    %v1838 = vand.u32 %v1739, 4294901760
    %1839 = vmatpush1.msra.mxu0 %v1838
    %1840 = vmatprep.subr.mxu0 0.0
    %1841 = vmatpush2.msra.mxu0 0.0
    %1842 = vmatprep.subr.mxu0 0.0
    %1843 = vmatpush2.msra.mxu0 0.0
    %1844 = vmatprep.subr.mxu0 0.0
    %1845 = vmatpush2.msra.mxu0 0.0
    %1846 = vmatprep.subr.mxu0 0.0
    %1847 = vmatpush2.msra.mxu0 0.0
    %1848 = vmatprep.subr.mxu0 0.0
    %1849 = vmatpush2.msra.mxu0 0.0
    %1850 = vmatprep.subr.mxu0 0.0
    %1851 = vmatpush2.msra.mxu0 0.0
    %1852 = vmatprep.subr.mxu0 0.0
    %1853 = vmatpush2.msra.mxu0 0.0
    %1854 = vmatprep.subr.mxu0 0.0
    %1855 = vmatpush2.msra.mxu0 0.0
    %1856 = vmatprep.subr.mxu0 0.0
    %1857 = vmatpush2.msra.mxu0 0.0
    %1858 = vmatprep.subr.mxu0 0.0
    %1859 = vmatpush2.msra.mxu0 0.0
    %1860 = vmatprep.subr.mxu0 0.0
    %1861 = vmatpush2.msra.mxu0 0.0
    %1862 = vmatprep.subr.mxu0 0.0
    %1863 = vmatpush2.msra.mxu0 0.0
    %1864 = vmatprep.subr.mxu0 0.0
    %1865 = vmatpush2.msra.mxu0 0.0
    %1866 = vmatprep.subr.mxu0 0.0
    %1867 = vmatpush2.msra.mxu0 0.0
    %1868 = vmatprep.subr.mxu0 0.0
    %1869 = vmatpush2.msra.mxu0 0.0
    %1870 = vmatprep.subr.mxu0 0.0
    %1871 = vmatpush2.msra.mxu0 0.0
    %1872 = vmatprep.mubr.f32.mxu0 0.0
    %v1873 = vand.u32 %v1769, 4294901760
    %v1874 = vsub.f32 %v1769, %v1873
    %v1875 = vand.u32 %v1874, 4294901760
    %v1876 = vsub.f32 %v1874, %v1875
    %v1877 = vand.u32 %v1876, 4294901760
    %1878 = vmatmul.mubr.f32.gmra.mxu0 %v1877
    %v1879 = vpop.f32.mrf.mxu0
    %v1880 = vadd.f32 %v1760, %v1879
    %v1881 = vpop.f32.mrf.mxu0
    %v1882 = vadd.f32 %v1764, %v1881
    %1883 = vmatprep.mubr.f32.mxu0 0.0
    %v1884 = vand.u32 %v1772, 4294901760
    %v1885 = vsub.f32 %v1772, %v1884
    %v1886 = vand.u32 %v1885, 4294901760
    %v1887 = vsub.f32 %v1885, %v1886
    %v1888 = vand.u32 %v1887, 4294901760
    %1889 = vmatmul.mubr.f32.gmra.mxu0 %v1888
    %v1890 = vpop.f32.mrf.mxu0
    %v1891 = vadd.f32 %v1760, %v1890
    %v1892 = vpop.f32.mrf.mxu0
    %v1893 = vadd.f32 %v1764, %v1892
    %1894 = vmatprep.mubr.f32.mxu0 0.0
    %v1895 = vand.u32 %v1775, 4294901760
    %v1896 = vsub.f32 %v1775, %v1895
    %v1897 = vand.u32 %v1896, 4294901760
    %v1898 = vsub.f32 %v1896, %v1897
    %v1899 = vand.u32 %v1898, 4294901760
    %1900 = vmatmul.mubr.f32.gmra.mxu0 %v1899
    %v1901 = vpop.f32.mrf.mxu0
    %v1902 = vadd.f32 %v1760, %v1901
    %v1903 = vpop.f32.mrf.mxu0
    %v1904 = vadd.f32 %v1764, %v1903
    %1905 = vmatprep.mubr.f32.mxu0 0.0
    %v1906 = vand.u32 %v1778, 4294901760
    %v1907 = vsub.f32 %v1778, %v1906
    %v1908 = vand.u32 %v1907, 4294901760
    %v1909 = vsub.f32 %v1907, %v1908
    %v1910 = vand.u32 %v1909, 4294901760
    %1911 = vmatmul.mubr.f32.gmra.mxu0 %v1910
    %v1912 = vpop.f32.mrf.mxu0
    %v1913 = vadd.f32 %v1760, %v1912
    %v1914 = vpop.f32.mrf.mxu0
    %v1915 = vadd.f32 %v1764, %v1914
    %1916 = vmatprep.mubr.f32.mxu0 0.0
    %v1917 = vand.u32 %v1781, 4294901760
    %v1918 = vsub.f32 %v1781, %v1917
    %v1919 = vand.u32 %v1918, 4294901760
    %v1920 = vsub.f32 %v1918, %v1919
    %v1921 = vand.u32 %v1920, 4294901760
    %1922 = vmatmul.mubr.f32.gmra.mxu0 %v1921
    %v1923 = vpop.f32.mrf.mxu0
    %v1924 = vadd.f32 %v1760, %v1923
    %v1925 = vpop.f32.mrf.mxu0
    %v1926 = vadd.f32 %v1764, %v1925
    %1927 = vmatprep.mubr.f32.mxu0 0.0
    %v1928 = vand.u32 %v1784, 4294901760
    %v1929 = vsub.f32 %v1784, %v1928
    %v1930 = vand.u32 %v1929, 4294901760
    %v1931 = vsub.f32 %v1929, %v1930
    %v1932 = vand.u32 %v1931, 4294901760
    %1933 = vmatmul.mubr.f32.gmra.mxu0 %v1932
    %v1934 = vpop.f32.mrf.mxu0
    %v1935 = vadd.f32 %v1760, %v1934
    %v1936 = vpop.f32.mrf.mxu0
    %v1937 = vadd.f32 %v1764, %v1936
    %1938 = vmatprep.mubr.f32.mxu0 0.0
    %v1939 = vand.u32 %v1787, 4294901760
    %v1940 = vsub.f32 %v1787, %v1939
    %v1941 = vand.u32 %v1940, 4294901760
    %v1942 = vsub.f32 %v1940, %v1941
    %v1943 = vand.u32 %v1942, 4294901760
    %1944 = vmatmul.mubr.f32.gmra.mxu0 %v1943
    %v1945 = vpop.f32.mrf.mxu0
    %v1946 = vadd.f32 %v1760, %v1945
    %v1947 = vpop.f32.mrf.mxu0
    %v1948 = vadd.f32 %v1764, %v1947
    %1949 = vmatprep.mubr.f32.mxu0 0.0
    %v1950 = vand.u32 %v1790, 4294901760
    %v1951 = vsub.f32 %v1790, %v1950
    %v1952 = vand.u32 %v1951, 4294901760
    %v1953 = vsub.f32 %v1951, %v1952
    %v1954 = vand.u32 %v1953, 4294901760
    %1955 = vmatmul.mubr.f32.gmra.mxu0 %v1954
    %v1956 = vpop.f32.mrf.mxu0
    %v1957 = vadd.f32 %v1760, %v1956
    %v1958 = vpop.f32.mrf.mxu0
    %v1959 = vadd.f32 %v1764, %v1958
    %1960 = vdwg.mxu0
    %1961 = vmatprep.subr.mxu0 0.0
    %1962 = vmatpush1.msra.mxu0 0.0
    %1963 = vmatprep.subr.mxu0 0.0
    %1964 = vmatpush1.msra.mxu0 0.0
    %1965 = vmatprep.subr.mxu0 0.0
    %1966 = vmatpush1.msra.mxu0 0.0
    %1967 = vmatprep.subr.mxu0 0.0
    %1968 = vmatpush1.msra.mxu0 0.0
    %1969 = vmatprep.subr.mxu0 0.0
    %1970 = vmatpush1.msra.mxu0 0.0
    %1971 = vmatprep.subr.mxu0 0.0
    %1972 = vmatpush1.msra.mxu0 0.0
    %1973 = vmatprep.subr.mxu0 0.0
    %1974 = vmatpush1.msra.mxu0 0.0
    %1975 = vmatprep.subr.mxu0 0.0
    %1976 = vmatpush1.msra.mxu0 0.0
    %v1977 = vand.u32 %v1754, 4294901760
    %v1978 = vsub.f32 %v1754, %v1977
    %v1979 = vand.u32 %v1978, 4294901760
    %v1980 = vsub.f32 %v1978, %v1979
    %v1981 = vand.u32 %v1980, 4294901760
    %1982 = vmatprep.subr.mxu0 %v1981
    %v1983 = vand.u32 %v1753, 4294901760
    %v1984 = vsub.f32 %v1753, %v1983
    %v1985 = vand.u32 %v1984, 4294901760
    %v1986 = vsub.f32 %v1984, %v1985
    %v1987 = vand.u32 %v1986, 4294901760
    %1988 = vmatpush1.msra.mxu0 %v1987
    %v1989 = vand.u32 %v1752, 4294901760
    %v1990 = vsub.f32 %v1752, %v1989
    %v1991 = vand.u32 %v1990, 4294901760
    %v1992 = vsub.f32 %v1990, %v1991
    %v1993 = vand.u32 %v1992, 4294901760
    %1994 = vmatprep.subr.mxu0 %v1993
    %v1995 = vand.u32 %v1751, 4294901760
    %v1996 = vsub.f32 %v1751, %v1995
    %v1997 = vand.u32 %v1996, 4294901760
    %v1998 = vsub.f32 %v1996, %v1997
    %v1999 = vand.u32 %v1998, 4294901760
    %2000 = vmatpush1.msra.mxu0 %v1999
    %v2001 = vand.u32 %v1750, 4294901760
    %v2002 = vsub.f32 %v1750, %v2001
    %v2003 = vand.u32 %v2002, 4294901760
    %v2004 = vsub.f32 %v2002, %v2003
    %v2005 = vand.u32 %v2004, 4294901760
    %2006 = vmatprep.subr.mxu0 %v2005
    %v2007 = vand.u32 %v1749, 4294901760
    %v2008 = vsub.f32 %v1749, %v2007
    %v2009 = vand.u32 %v2008, 4294901760
    %v2010 = vsub.f32 %v2008, %v2009
    %v2011 = vand.u32 %v2010, 4294901760
    %2012 = vmatpush1.msra.mxu0 %v2011
    %v2013 = vand.u32 %v1748, 4294901760
    %v2014 = vsub.f32 %v1748, %v2013
    %v2015 = vand.u32 %v2014, 4294901760
    %v2016 = vsub.f32 %v2014, %v2015
    %v2017 = vand.u32 %v2016, 4294901760
    %2018 = vmatprep.subr.mxu0 %v2017
    %v2019 = vand.u32 %v1747, 4294901760
    %v2020 = vsub.f32 %v1747, %v2019
    %v2021 = vand.u32 %v2020, 4294901760
    %v2022 = vsub.f32 %v2020, %v2021
    %v2023 = vand.u32 %v2022, 4294901760
    %2024 = vmatpush1.msra.mxu0 %v2023
    %v2025 = vand.u32 %v1746, 4294901760
    %v2026 = vsub.f32 %v1746, %v2025
    %v2027 = vand.u32 %v2026, 4294901760
    %v2028 = vsub.f32 %v2026, %v2027
    %v2029 = vand.u32 %v2028, 4294901760
    %2030 = vmatprep.subr.mxu0 %v2029
    %v2031 = vand.u32 %v1745, 4294901760
    %v2032 = vsub.f32 %v1745, %v2031
    %v2033 = vand.u32 %v2032, 4294901760
    %v2034 = vsub.f32 %v2032, %v2033
    %v2035 = vand.u32 %v2034, 4294901760
    %2036 = vmatpush1.msra.mxu0 %v2035
    %v2037 = vand.u32 %v1744, 4294901760
    %v2038 = vsub.f32 %v1744, %v2037
    %v2039 = vand.u32 %v2038, 4294901760
    %v2040 = vsub.f32 %v2038, %v2039
    %v2041 = vand.u32 %v2040, 4294901760
    %2042 = vmatprep.subr.mxu0 %v2041
    %v2043 = vand.u32 %v1743, 4294901760
    %v2044 = vsub.f32 %v1743, %v2043
    %v2045 = vand.u32 %v2044, 4294901760
    %v2046 = vsub.f32 %v2044, %v2045
    %v2047 = vand.u32 %v2046, 4294901760
    %2048 = vmatpush1.msra.mxu0 %v2047
    %v2049 = vand.u32 %v1742, 4294901760
    %v2050 = vsub.f32 %v1742, %v2049
    %v2051 = vand.u32 %v2050, 4294901760
    %v2052 = vsub.f32 %v2050, %v2051
    %v2053 = vand.u32 %v2052, 4294901760
    %2054 = vmatprep.subr.mxu0 %v2053
    %v2055 = vand.u32 %v1741, 4294901760
    %v2056 = vsub.f32 %v1741, %v2055
    %v2057 = vand.u32 %v2056, 4294901760
    %v2058 = vsub.f32 %v2056, %v2057
    %v2059 = vand.u32 %v2058, 4294901760
    %2060 = vmatpush1.msra.mxu0 %v2059
    %v2061 = vand.u32 %v1740, 4294901760
    %v2062 = vsub.f32 %v1740, %v2061
    %v2063 = vand.u32 %v2062, 4294901760
    %v2064 = vsub.f32 %v2062, %v2063
    %v2065 = vand.u32 %v2064, 4294901760
    %2066 = vmatprep.subr.mxu0 %v2065
    %v2067 = vand.u32 %v1739, 4294901760
    %v2068 = vsub.f32 %v1739, %v2067
    %v2069 = vand.u32 %v2068, 4294901760
    %v2070 = vsub.f32 %v2068, %v2069
    %v2071 = vand.u32 %v2070, 4294901760
    %2072 = vmatpush1.msra.mxu0 %v2071
    %2073 = vmatprep.subr.mxu0 0.0
    %2074 = vmatpush2.msra.mxu0 0.0
    %2075 = vmatprep.subr.mxu0 0.0
    %2076 = vmatpush2.msra.mxu0 0.0
    %2077 = vmatprep.subr.mxu0 0.0
    %2078 = vmatpush2.msra.mxu0 0.0
    %2079 = vmatprep.subr.mxu0 0.0
    %2080 = vmatpush2.msra.mxu0 0.0
    %2081 = vmatprep.subr.mxu0 0.0
    %2082 = vmatpush2.msra.mxu0 0.0
    %2083 = vmatprep.subr.mxu0 0.0
    %2084 = vmatpush2.msra.mxu0 0.0
    %2085 = vmatprep.subr.mxu0 0.0
    %2086 = vmatpush2.msra.mxu0 0.0
    %2087 = vmatprep.subr.mxu0 0.0
    %2088 = vmatpush2.msra.mxu0 0.0
    %2089 = vmatprep.subr.mxu0 0.0
    %2090 = vmatpush2.msra.mxu0 0.0
    %2091 = vmatprep.subr.mxu0 0.0
    %2092 = vmatpush2.msra.mxu0 0.0
    %2093 = vmatprep.subr.mxu0 0.0
    %2094 = vmatpush2.msra.mxu0 0.0
    %2095 = vmatprep.subr.mxu0 0.0
    %2096 = vmatpush2.msra.mxu0 0.0
    %2097 = vmatprep.subr.mxu0 0.0
    %2098 = vmatpush2.msra.mxu0 0.0
    %2099 = vmatprep.subr.mxu0 0.0
    %2100 = vmatpush2.msra.mxu0 0.0
    %2101 = vmatprep.subr.mxu0 0.0
    %2102 = vmatpush2.msra.mxu0 0.0
    %2103 = vmatprep.subr.mxu0 0.0
    %2104 = vmatpush2.msra.mxu0 0.0
    %2105 = vmatprep.mubr.f32.mxu0 0.0
    %v2106 = vand.u32 %v1769, 4294901760
    %2107 = vmatmul.mubr.f32.gmra.mxu0 %v2106
    %v2108 = vpop.f32.mrf.mxu0
    %v2109 = vadd.f32 %v1880, %v2108
    %v2110 = vpop.f32.mrf.mxu0
    %v2111 = vadd.f32 %v1882, %v2110
    %2112 = vmatprep.mubr.f32.mxu0 0.0
    %v2113 = vand.u32 %v1772, 4294901760
    %2114 = vmatmul.mubr.f32.gmra.mxu0 %v2113
    %v2115 = vpop.f32.mrf.mxu0
    %v2116 = vadd.f32 %v1891, %v2115
    %v2117 = vpop.f32.mrf.mxu0
    %v2118 = vadd.f32 %v1893, %v2117
    %2119 = vmatprep.mubr.f32.mxu0 0.0
    %v2120 = vand.u32 %v1775, 4294901760
    %2121 = vmatmul.mubr.f32.gmra.mxu0 %v2120
    %v2122 = vpop.f32.mrf.mxu0
    %v2123 = vadd.f32 %v1902, %v2122
    %v2124 = vpop.f32.mrf.mxu0
    %v2125 = vadd.f32 %v1904, %v2124
    %2126 = vmatprep.mubr.f32.mxu0 0.0
    %v2127 = vand.u32 %v1778, 4294901760
    %2128 = vmatmul.mubr.f32.gmra.mxu0 %v2127
    %v2129 = vpop.f32.mrf.mxu0
    %v2130 = vadd.f32 %v1913, %v2129
    %v2131 = vpop.f32.mrf.mxu0
    %v2132 = vadd.f32 %v1915, %v2131
    %2133 = vmatprep.mubr.f32.mxu0 0.0
    %v2134 = vand.u32 %v1781, 4294901760
    %2135 = vmatmul.mubr.f32.gmra.mxu0 %v2134
    %v2136 = vpop.f32.mrf.mxu0
    %v2137 = vadd.f32 %v1924, %v2136
    %v2138 = vpop.f32.mrf.mxu0
    %v2139 = vadd.f32 %v1926, %v2138
    %2140 = vmatprep.mubr.f32.mxu0 0.0
    %v2141 = vand.u32 %v1784, 4294901760
    %2142 = vmatmul.mubr.f32.gmra.mxu0 %v2141
    %v2143 = vpop.f32.mrf.mxu0
    %v2144 = vadd.f32 %v1935, %v2143
    %v2145 = vpop.f32.mrf.mxu0
    %v2146 = vadd.f32 %v1937, %v2145
    %2147 = vmatprep.mubr.f32.mxu0 0.0
    %v2148 = vand.u32 %v1787, 4294901760
    %2149 = vmatmul.mubr.f32.gmra.mxu0 %v2148
    %v2150 = vpop.f32.mrf.mxu0
    %v2151 = vadd.f32 %v1946, %v2150
    %v2152 = vpop.f32.mrf.mxu0
    %v2153 = vadd.f32 %v1948, %v2152
    %2154 = vmatprep.mubr.f32.mxu0 0.0
    %v2155 = vand.u32 %v1790, 4294901760
    %2156 = vmatmul.mubr.f32.gmra.mxu0 %v2155
    %v2157 = vpop.f32.mrf.mxu0
    %v2158 = vadd.f32 %v1957, %v2157
    %v2159 = vpop.f32.mrf.mxu0
    %v2160 = vadd.f32 %v1959, %v2159
    %2161 = vdwg.mxu0
    %2162 = vmatprep.subr.mxu0 0.0
    %2163 = vmatpush1.msra.mxu0 0.0
    %2164 = vmatprep.subr.mxu0 0.0
    %2165 = vmatpush1.msra.mxu0 0.0
    %2166 = vmatprep.subr.mxu0 0.0
    %2167 = vmatpush1.msra.mxu0 0.0
    %2168 = vmatprep.subr.mxu0 0.0
    %2169 = vmatpush1.msra.mxu0 0.0
    %2170 = vmatprep.subr.mxu0 0.0
    %2171 = vmatpush1.msra.mxu0 0.0
    %2172 = vmatprep.subr.mxu0 0.0
    %2173 = vmatpush1.msra.mxu0 0.0
    %2174 = vmatprep.subr.mxu0 0.0
    %2175 = vmatpush1.msra.mxu0 0.0
    %2176 = vmatprep.subr.mxu0 0.0
    %2177 = vmatpush1.msra.mxu0 0.0
    %v2178 = vand.u32 %v1754, 4294901760
    %v2179 = vsub.f32 %v1754, %v2178
    %2180 = vmatprep.subr.mxu0 %v2179
    %v2181 = vand.u32 %v1753, 4294901760
    %v2182 = vsub.f32 %v1753, %v2181
    %2183 = vmatpush1.msra.mxu0 %v2182
    %v2184 = vand.u32 %v1752, 4294901760
    %v2185 = vsub.f32 %v1752, %v2184
    %2186 = vmatprep.subr.mxu0 %v2185
    %v2187 = vand.u32 %v1751, 4294901760
    %v2188 = vsub.f32 %v1751, %v2187
    %2189 = vmatpush1.msra.mxu0 %v2188
    %v2190 = vand.u32 %v1750, 4294901760
    %v2191 = vsub.f32 %v1750, %v2190
    %2192 = vmatprep.subr.mxu0 %v2191
    %v2193 = vand.u32 %v1749, 4294901760
    %v2194 = vsub.f32 %v1749, %v2193
    %2195 = vmatpush1.msra.mxu0 %v2194
    %v2196 = vand.u32 %v1748, 4294901760
    %v2197 = vsub.f32 %v1748, %v2196
    %2198 = vmatprep.subr.mxu0 %v2197
    %v2199 = vand.u32 %v1747, 4294901760
    %v2200 = vsub.f32 %v1747, %v2199
    %2201 = vmatpush1.msra.mxu0 %v2200
    %v2202 = vand.u32 %v1746, 4294901760
    %v2203 = vsub.f32 %v1746, %v2202
    %2204 = vmatprep.subr.mxu0 %v2203
    %v2205 = vand.u32 %v1745, 4294901760
    %v2206 = vsub.f32 %v1745, %v2205
    %2207 = vmatpush1.msra.mxu0 %v2206
    %v2208 = vand.u32 %v1744, 4294901760
    %v2209 = vsub.f32 %v1744, %v2208
    %2210 = vmatprep.subr.mxu0 %v2209
    %v2211 = vand.u32 %v1743, 4294901760
    %v2212 = vsub.f32 %v1743, %v2211
    %2213 = vmatpush1.msra.mxu0 %v2212
    %v2214 = vand.u32 %v1742, 4294901760
    %v2215 = vsub.f32 %v1742, %v2214
    %2216 = vmatprep.subr.mxu0 %v2215
    %v2217 = vand.u32 %v1741, 4294901760
    %v2218 = vsub.f32 %v1741, %v2217
    %2219 = vmatpush1.msra.mxu0 %v2218
    %v2220 = vand.u32 %v1740, 4294901760
    %v2221 = vsub.f32 %v1740, %v2220
    %2222 = vmatprep.subr.mxu0 %v2221
    %v2223 = vand.u32 %v1739, 4294901760
    %v2224 = vsub.f32 %v1739, %v2223
    %2225 = vmatpush1.msra.mxu0 %v2224
    %2226 = vmatprep.subr.mxu0 0.0
    %2227 = vmatpush2.msra.mxu0 0.0
    %2228 = vmatprep.subr.mxu0 0.0
    %2229 = vmatpush2.msra.mxu0 0.0
    %2230 = vmatprep.subr.mxu0 0.0
    %2231 = vmatpush2.msra.mxu0 0.0
    %2232 = vmatprep.subr.mxu0 0.0
    %2233 = vmatpush2.msra.mxu0 0.0
    %2234 = vmatprep.subr.mxu0 0.0
    %2235 = vmatpush2.msra.mxu0 0.0
    %2236 = vmatprep.subr.mxu0 0.0
    %2237 = vmatpush2.msra.mxu0 0.0
    %2238 = vmatprep.subr.mxu0 0.0
    %2239 = vmatpush2.msra.mxu0 0.0
    %2240 = vmatprep.subr.mxu0 0.0
    %2241 = vmatpush2.msra.mxu0 0.0
    %2242 = vmatprep.subr.mxu0 0.0
    %2243 = vmatpush2.msra.mxu0 0.0
    %2244 = vmatprep.subr.mxu0 0.0
    %2245 = vmatpush2.msra.mxu0 0.0
    %2246 = vmatprep.subr.mxu0 0.0
    %2247 = vmatpush2.msra.mxu0 0.0
    %2248 = vmatprep.subr.mxu0 0.0
    %2249 = vmatpush2.msra.mxu0 0.0
    %2250 = vmatprep.subr.mxu0 0.0
    %2251 = vmatpush2.msra.mxu0 0.0
    %2252 = vmatprep.subr.mxu0 0.0
    %2253 = vmatpush2.msra.mxu0 0.0
    %2254 = vmatprep.subr.mxu0 0.0
    %2255 = vmatpush2.msra.mxu0 0.0
    %2256 = vmatprep.subr.mxu0 0.0
    %2257 = vmatpush2.msra.mxu0 0.0
    %2258 = vmatprep.mubr.f32.mxu0 0.0
    %v2259 = vand.u32 %v1769, 4294901760
    %v2260 = vsub.f32 %v1769, %v2259
    %2261 = vmatmul.mubr.f32.gmra.mxu0 %v2260
    %v2262 = vpop.f32.mrf.mxu0
    %v2263 = vadd.f32 %v2109, %v2262
    %v2264 = vpop.f32.mrf.mxu0
    %v2265 = vadd.f32 %v2111, %v2264
    %2266 = vmatprep.mubr.f32.mxu0 0.0
    %v2267 = vand.u32 %v1772, 4294901760
    %v2268 = vsub.f32 %v1772, %v2267
    %2269 = vmatmul.mubr.f32.gmra.mxu0 %v2268
    %v2270 = vpop.f32.mrf.mxu0
    %v2271 = vadd.f32 %v2116, %v2270
    %v2272 = vpop.f32.mrf.mxu0
    %v2273 = vadd.f32 %v2118, %v2272
    %2274 = vmatprep.mubr.f32.mxu0 0.0
    %v2275 = vand.u32 %v1775, 4294901760
    %v2276 = vsub.f32 %v1775, %v2275
    %2277 = vmatmul.mubr.f32.gmra.mxu0 %v2276
    %v2278 = vpop.f32.mrf.mxu0
    %v2279 = vadd.f32 %v2123, %v2278
    %v2280 = vpop.f32.mrf.mxu0
    %v2281 = vadd.f32 %v2125, %v2280
    %2282 = vmatprep.mubr.f32.mxu0 0.0
    %v2283 = vand.u32 %v1778, 4294901760
    %v2284 = vsub.f32 %v1778, %v2283
    %2285 = vmatmul.mubr.f32.gmra.mxu0 %v2284
    %v2286 = vpop.f32.mrf.mxu0
    %v2287 = vadd.f32 %v2130, %v2286
    %v2288 = vpop.f32.mrf.mxu0
    %v2289 = vadd.f32 %v2132, %v2288
    %2290 = vmatprep.mubr.f32.mxu0 0.0
    %v2291 = vand.u32 %v1781, 4294901760
    %v2292 = vsub.f32 %v1781, %v2291
    %2293 = vmatmul.mubr.f32.gmra.mxu0 %v2292
    %v2294 = vpop.f32.mrf.mxu0
    %v2295 = vadd.f32 %v2137, %v2294
    %v2296 = vpop.f32.mrf.mxu0
    %v2297 = vadd.f32 %v2139, %v2296
    %2298 = vmatprep.mubr.f32.mxu0 0.0
    %v2299 = vand.u32 %v1784, 4294901760
    %v2300 = vsub.f32 %v1784, %v2299
    %2301 = vmatmul.mubr.f32.gmra.mxu0 %v2300
    %v2302 = vpop.f32.mrf.mxu0
    %v2303 = vadd.f32 %v2144, %v2302
    %v2304 = vpop.f32.mrf.mxu0
    %v2305 = vadd.f32 %v2146, %v2304
    %2306 = vmatprep.mubr.f32.mxu0 0.0
    %v2307 = vand.u32 %v1787, 4294901760
    %v2308 = vsub.f32 %v1787, %v2307
    %2309 = vmatmul.mubr.f32.gmra.mxu0 %v2308
    %v2310 = vpop.f32.mrf.mxu0
    %v2311 = vadd.f32 %v2151, %v2310
    %v2312 = vpop.f32.mrf.mxu0
    %v2313 = vadd.f32 %v2153, %v2312
    %2314 = vmatprep.mubr.f32.mxu0 0.0
    %v2315 = vand.u32 %v1790, 4294901760
    %v2316 = vsub.f32 %v1790, %v2315
    %2317 = vmatmul.mubr.f32.gmra.mxu0 %v2316
    %v2318 = vpop.f32.mrf.mxu0
    %v2319 = vadd.f32 %v2158, %v2318
    %v2320 = vpop.f32.mrf.mxu0
    %v2321 = vadd.f32 %v2160, %v2320
    %2322 = vdwg.mxu0
    %2323 = vmatprep.subr.mxu0 0.0
    %2324 = vmatpush1.msra.mxu0 0.0
    %2325 = vmatprep.subr.mxu0 0.0
    %2326 = vmatpush1.msra.mxu0 0.0
    %2327 = vmatprep.subr.mxu0 0.0
    %2328 = vmatpush1.msra.mxu0 0.0
    %2329 = vmatprep.subr.mxu0 0.0
    %2330 = vmatpush1.msra.mxu0 0.0
    %2331 = vmatprep.subr.mxu0 0.0
    %2332 = vmatpush1.msra.mxu0 0.0
    %2333 = vmatprep.subr.mxu0 0.0
    %2334 = vmatpush1.msra.mxu0 0.0
    %2335 = vmatprep.subr.mxu0 0.0
    %2336 = vmatpush1.msra.mxu0 0.0
    %2337 = vmatprep.subr.mxu0 0.0
    %2338 = vmatpush1.msra.mxu0 0.0
    %v2339 = vand.u32 %v1754, 4294901760
    %2340 = vmatprep.subr.mxu0 %v2339
    %v2341 = vand.u32 %v1753, 4294901760
    %2342 = vmatpush1.msra.mxu0 %v2341
    %v2343 = vand.u32 %v1752, 4294901760
    %2344 = vmatprep.subr.mxu0 %v2343
    %v2345 = vand.u32 %v1751, 4294901760
    %2346 = vmatpush1.msra.mxu0 %v2345
    %v2347 = vand.u32 %v1750, 4294901760
    %2348 = vmatprep.subr.mxu0 %v2347
    %v2349 = vand.u32 %v1749, 4294901760
    %2350 = vmatpush1.msra.mxu0 %v2349
    %v2351 = vand.u32 %v1748, 4294901760
    %2352 = vmatprep.subr.mxu0 %v2351
    %v2353 = vand.u32 %v1747, 4294901760
    %2354 = vmatpush1.msra.mxu0 %v2353
    %v2355 = vand.u32 %v1746, 4294901760
    %2356 = vmatprep.subr.mxu0 %v2355
    %v2357 = vand.u32 %v1745, 4294901760
    %2358 = vmatpush1.msra.mxu0 %v2357
    %v2359 = vand.u32 %v1744, 4294901760
    %2360 = vmatprep.subr.mxu0 %v2359
    %v2361 = vand.u32 %v1743, 4294901760
    %2362 = vmatpush1.msra.mxu0 %v2361
    %v2363 = vand.u32 %v1742, 4294901760
    %2364 = vmatprep.subr.mxu0 %v2363
    %v2365 = vand.u32 %v1741, 4294901760
    %2366 = vmatpush1.msra.mxu0 %v2365
    %v2367 = vand.u32 %v1740, 4294901760
    %2368 = vmatprep.subr.mxu0 %v2367
    %v2369 = vand.u32 %v1739, 4294901760
    %2370 = vmatpush1.msra.mxu0 %v2369
    %2371 = vmatprep.subr.mxu0 0.0
    %2372 = vmatpush2.msra.mxu0 0.0
    %2373 = vmatprep.subr.mxu0 0.0
    %2374 = vmatpush2.msra.mxu0 0.0
    %2375 = vmatprep.subr.mxu0 0.0
    %2376 = vmatpush2.msra.mxu0 0.0
    %2377 = vmatprep.subr.mxu0 0.0
    %2378 = vmatpush2.msra.mxu0 0.0
    %2379 = vmatprep.subr.mxu0 0.0
    %2380 = vmatpush2.msra.mxu0 0.0
    %2381 = vmatprep.subr.mxu0 0.0
    %2382 = vmatpush2.msra.mxu0 0.0
    %2383 = vmatprep.subr.mxu0 0.0
    %2384 = vmatpush2.msra.mxu0 0.0
    %2385 = vmatprep.subr.mxu0 0.0
    %2386 = vmatpush2.msra.mxu0 0.0
    %2387 = vmatprep.subr.mxu0 0.0
    %2388 = vmatpush2.msra.mxu0 0.0
    %2389 = vmatprep.subr.mxu0 0.0
    %2390 = vmatpush2.msra.mxu0 0.0
    %2391 = vmatprep.subr.mxu0 0.0
    %2392 = vmatpush2.msra.mxu0 0.0
    %2393 = vmatprep.subr.mxu0 0.0
    %2394 = vmatpush2.msra.mxu0 0.0
    %2395 = vmatprep.subr.mxu0 0.0
    %2396 = vmatpush2.msra.mxu0 0.0
    %2397 = vmatprep.subr.mxu0 0.0
    %2398 = vmatpush2.msra.mxu0 0.0
    %2399 = vmatprep.subr.mxu0 0.0
    %2400 = vmatpush2.msra.mxu0 0.0
    %2401 = vmatprep.subr.mxu0 0.0
    %2402 = vmatpush2.msra.mxu0 0.0
    %2403 = vmatprep.mubr.f32.mxu0 0.0
    %v2404 = vand.u32 %v1769, 4294901760
    %v2405 = vsub.f32 %v1769, %v2404
    %v2406 = vand.u32 %v2405, 4294901760
    %2407 = vmatmul.mubr.f32.gmra.mxu0 %v2406
    %v2408 = vpop.f32.mrf.mxu0
    %v2409 = vadd.f32 %v2263, %v2408
    %v2410 = vpop.f32.mrf.mxu0
    %v2411 = vadd.f32 %v2265, %v2410
    %2412 = vmatprep.mubr.f32.mxu0 0.0
    %v2413 = vand.u32 %v1772, 4294901760
    %v2414 = vsub.f32 %v1772, %v2413
    %v2415 = vand.u32 %v2414, 4294901760
    %2416 = vmatmul.mubr.f32.gmra.mxu0 %v2415
    %v2417 = vpop.f32.mrf.mxu0
    %v2418 = vadd.f32 %v2271, %v2417
    %v2419 = vpop.f32.mrf.mxu0
    %v2420 = vadd.f32 %v2273, %v2419
    %2421 = vmatprep.mubr.f32.mxu0 0.0
    %v2422 = vand.u32 %v1775, 4294901760
    %v2423 = vsub.f32 %v1775, %v2422
    %v2424 = vand.u32 %v2423, 4294901760
    %2425 = vmatmul.mubr.f32.gmra.mxu0 %v2424
    %v2426 = vpop.f32.mrf.mxu0
    %v2427 = vadd.f32 %v2279, %v2426
    %v2428 = vpop.f32.mrf.mxu0
    %v2429 = vadd.f32 %v2281, %v2428
    %2430 = vmatprep.mubr.f32.mxu0 0.0
    %v2431 = vand.u32 %v1778, 4294901760
    %v2432 = vsub.f32 %v1778, %v2431
    %v2433 = vand.u32 %v2432, 4294901760
    %2434 = vmatmul.mubr.f32.gmra.mxu0 %v2433
    %v2435 = vpop.f32.mrf.mxu0
    %v2436 = vadd.f32 %v2287, %v2435
    %v2437 = vpop.f32.mrf.mxu0
    %v2438 = vadd.f32 %v2289, %v2437
    %2439 = vmatprep.mubr.f32.mxu0 0.0
    %v2440 = vand.u32 %v1781, 4294901760
    %v2441 = vsub.f32 %v1781, %v2440
    %v2442 = vand.u32 %v2441, 4294901760
    %2443 = vmatmul.mubr.f32.gmra.mxu0 %v2442
    %v2444 = vpop.f32.mrf.mxu0
    %v2445 = vadd.f32 %v2295, %v2444
    %v2446 = vpop.f32.mrf.mxu0
    %v2447 = vadd.f32 %v2297, %v2446
    %2448 = vmatprep.mubr.f32.mxu0 0.0
    %v2449 = vand.u32 %v1784, 4294901760
    %v2450 = vsub.f32 %v1784, %v2449
    %v2451 = vand.u32 %v2450, 4294901760
    %2452 = vmatmul.mubr.f32.gmra.mxu0 %v2451
    %v2453 = vpop.f32.mrf.mxu0
    %v2454 = vadd.f32 %v2303, %v2453
    %v2455 = vpop.f32.mrf.mxu0
    %v2456 = vadd.f32 %v2305, %v2455
    %2457 = vmatprep.mubr.f32.mxu0 0.0
    %v2458 = vand.u32 %v1787, 4294901760
    %v2459 = vsub.f32 %v1787, %v2458
    %v2460 = vand.u32 %v2459, 4294901760
    %2461 = vmatmul.mubr.f32.gmra.mxu0 %v2460
    %v2462 = vpop.f32.mrf.mxu0
    %v2463 = vadd.f32 %v2311, %v2462
    %v2464 = vpop.f32.mrf.mxu0
    %v2465 = vadd.f32 %v2313, %v2464
    %2466 = vmatprep.mubr.f32.mxu0 0.0
    %v2467 = vand.u32 %v1790, 4294901760
    %v2468 = vsub.f32 %v1790, %v2467
    %v2469 = vand.u32 %v2468, 4294901760
    %2470 = vmatmul.mubr.f32.gmra.mxu0 %v2469
    %v2471 = vpop.f32.mrf.mxu0
    %v2472 = vadd.f32 %v2319, %v2471
    %v2473 = vpop.f32.mrf.mxu0
    %v2474 = vadd.f32 %v2321, %v2473
    %2475 = vdwg.mxu0
    %2476 = vmatprep.subr.mxu0 0.0
    %2477 = vmatpush1.msra.mxu0 0.0
    %2478 = vmatprep.subr.mxu0 0.0
    %2479 = vmatpush1.msra.mxu0 0.0
    %2480 = vmatprep.subr.mxu0 0.0
    %2481 = vmatpush1.msra.mxu0 0.0
    %2482 = vmatprep.subr.mxu0 0.0
    %2483 = vmatpush1.msra.mxu0 0.0
    %2484 = vmatprep.subr.mxu0 0.0
    %2485 = vmatpush1.msra.mxu0 0.0
    %2486 = vmatprep.subr.mxu0 0.0
    %2487 = vmatpush1.msra.mxu0 0.0
    %2488 = vmatprep.subr.mxu0 0.0
    %2489 = vmatpush1.msra.mxu0 0.0
    %2490 = vmatprep.subr.mxu0 0.0
    %2491 = vmatpush1.msra.mxu0 0.0
    %v2492 = vand.u32 %v1754, 4294901760
    %v2493 = vsub.f32 %v1754, %v2492
    %v2494 = vand.u32 %v2493, 4294901760
    %2495 = vmatprep.subr.mxu0 %v2494
    %v2496 = vand.u32 %v1753, 4294901760
    %v2497 = vsub.f32 %v1753, %v2496
    %v2498 = vand.u32 %v2497, 4294901760
    %2499 = vmatpush1.msra.mxu0 %v2498
    %v2500 = vand.u32 %v1752, 4294901760
    %v2501 = vsub.f32 %v1752, %v2500
    %v2502 = vand.u32 %v2501, 4294901760
    %2503 = vmatprep.subr.mxu0 %v2502
    %v2504 = vand.u32 %v1751, 4294901760
    %v2505 = vsub.f32 %v1751, %v2504
    %v2506 = vand.u32 %v2505, 4294901760
    %2507 = vmatpush1.msra.mxu0 %v2506
    %v2508 = vand.u32 %v1750, 4294901760
    %v2509 = vsub.f32 %v1750, %v2508
    %v2510 = vand.u32 %v2509, 4294901760
    %2511 = vmatprep.subr.mxu0 %v2510
    %v2512 = vand.u32 %v1749, 4294901760
    %v2513 = vsub.f32 %v1749, %v2512
    %v2514 = vand.u32 %v2513, 4294901760
    %2515 = vmatpush1.msra.mxu0 %v2514
    %v2516 = vand.u32 %v1748, 4294901760
    %v2517 = vsub.f32 %v1748, %v2516
    %v2518 = vand.u32 %v2517, 4294901760
    %2519 = vmatprep.subr.mxu0 %v2518
    %v2520 = vand.u32 %v1747, 4294901760
    %v2521 = vsub.f32 %v1747, %v2520
    %v2522 = vand.u32 %v2521, 4294901760
    %2523 = vmatpush1.msra.mxu0 %v2522
    %v2524 = vand.u32 %v1746, 4294901760
    %v2525 = vsub.f32 %v1746, %v2524
    %v2526 = vand.u32 %v2525, 4294901760
    %2527 = vmatprep.subr.mxu0 %v2526
    %v2528 = vand.u32 %v1745, 4294901760
    %v2529 = vsub.f32 %v1745, %v2528
    %v2530 = vand.u32 %v2529, 4294901760
    %2531 = vmatpush1.msra.mxu0 %v2530
    %v2532 = vand.u32 %v1744, 4294901760
    %v2533 = vsub.f32 %v1744, %v2532
    %v2534 = vand.u32 %v2533, 4294901760
    %2535 = vmatprep.subr.mxu0 %v2534
    %v2536 = vand.u32 %v1743, 4294901760
    %v2537 = vsub.f32 %v1743, %v2536
    %v2538 = vand.u32 %v2537, 4294901760
    %2539 = vmatpush1.msra.mxu0 %v2538
    %v2540 = vand.u32 %v1742, 4294901760
    %v2541 = vsub.f32 %v1742, %v2540
    %v2542 = vand.u32 %v2541, 4294901760
    %2543 = vmatprep.subr.mxu0 %v2542
    %v2544 = vand.u32 %v1741, 4294901760
    %v2545 = vsub.f32 %v1741, %v2544
    %v2546 = vand.u32 %v2545, 4294901760
    %2547 = vmatpush1.msra.mxu0 %v2546
    %v2548 = vand.u32 %v1740, 4294901760
    %v2549 = vsub.f32 %v1740, %v2548
    %v2550 = vand.u32 %v2549, 4294901760
    %2551 = vmatprep.subr.mxu0 %v2550
    %v2552 = vand.u32 %v1739, 4294901760
    %v2553 = vsub.f32 %v1739, %v2552
    %v2554 = vand.u32 %v2553, 4294901760
    %2555 = vmatpush1.msra.mxu0 %v2554
    %2556 = vmatprep.subr.mxu0 0.0
    %2557 = vmatpush2.msra.mxu0 0.0
    %2558 = vmatprep.subr.mxu0 0.0
    %2559 = vmatpush2.msra.mxu0 0.0
    %2560 = vmatprep.subr.mxu0 0.0
    %2561 = vmatpush2.msra.mxu0 0.0
    %2562 = vmatprep.subr.mxu0 0.0
    %2563 = vmatpush2.msra.mxu0 0.0
    %2564 = vmatprep.subr.mxu0 0.0
    %2565 = vmatpush2.msra.mxu0 0.0
    %2566 = vmatprep.subr.mxu0 0.0
    %2567 = vmatpush2.msra.mxu0 0.0
    %2568 = vmatprep.subr.mxu0 0.0
    %2569 = vmatpush2.msra.mxu0 0.0
    %2570 = vmatprep.subr.mxu0 0.0
    %2571 = vmatpush2.msra.mxu0 0.0
    %2572 = vmatprep.subr.mxu0 0.0
    %2573 = vmatpush2.msra.mxu0 0.0
    %2574 = vmatprep.subr.mxu0 0.0
    %2575 = vmatpush2.msra.mxu0 0.0
    %2576 = vmatprep.subr.mxu0 0.0
    %2577 = vmatpush2.msra.mxu0 0.0
    %2578 = vmatprep.subr.mxu0 0.0
    %2579 = vmatpush2.msra.mxu0 0.0
    %2580 = vmatprep.subr.mxu0 0.0
    %2581 = vmatpush2.msra.mxu0 0.0
    %2582 = vmatprep.subr.mxu0 0.0
    %2583 = vmatpush2.msra.mxu0 0.0
    %2584 = vmatprep.subr.mxu0 0.0
    %2585 = vmatpush2.msra.mxu0 0.0
    %2586 = vmatprep.subr.mxu0 0.0
    %2587 = vmatpush2.msra.mxu0 0.0
    %2588 = vmatprep.mubr.f32.mxu0 0.0
    %v2589 = vand.u32 %v1769, 4294901760
    %2590 = vmatmul.mubr.f32.gmra.mxu0 %v2589
    %v2591 = vpop.f32.mrf.mxu0
    %v2592 = vadd.f32 %v2409, %v2591
    %v2593 = vpop.f32.mrf.mxu0
    %v2594 = vadd.f32 %v2411, %v2593
    %2595 = vmatprep.mubr.f32.mxu0 0.0
    %v2596 = vand.u32 %v1772, 4294901760
    %2597 = vmatmul.mubr.f32.gmra.mxu0 %v2596
    %v2598 = vpop.f32.mrf.mxu0
    %v2599 = vadd.f32 %v2418, %v2598
    %v2600 = vpop.f32.mrf.mxu0
    %v2601 = vadd.f32 %v2420, %v2600
    %2602 = vmatprep.mubr.f32.mxu0 0.0
    %v2603 = vand.u32 %v1775, 4294901760
    %2604 = vmatmul.mubr.f32.gmra.mxu0 %v2603
    %v2605 = vpop.f32.mrf.mxu0
    %v2606 = vadd.f32 %v2427, %v2605
    %v2607 = vpop.f32.mrf.mxu0
    %v2608 = vadd.f32 %v2429, %v2607
    %2609 = vmatprep.mubr.f32.mxu0 0.0
    %v2610 = vand.u32 %v1778, 4294901760
    %2611 = vmatmul.mubr.f32.gmra.mxu0 %v2610
    %v2612 = vpop.f32.mrf.mxu0
    %v2613 = vadd.f32 %v2436, %v2612
    %v2614 = vpop.f32.mrf.mxu0
    %v2615 = vadd.f32 %v2438, %v2614
    %2616 = vmatprep.mubr.f32.mxu0 0.0
    %v2617 = vand.u32 %v1781, 4294901760
    %2618 = vmatmul.mubr.f32.gmra.mxu0 %v2617
    %v2619 = vpop.f32.mrf.mxu0
    %v2620 = vadd.f32 %v2445, %v2619
    %v2621 = vpop.f32.mrf.mxu0
    %v2622 = vadd.f32 %v2447, %v2621
    %2623 = vmatprep.mubr.f32.mxu0 0.0
    %v2624 = vand.u32 %v1784, 4294901760
    %2625 = vmatmul.mubr.f32.gmra.mxu0 %v2624
    %v2626 = vpop.f32.mrf.mxu0
    %v2627 = vadd.f32 %v2454, %v2626
    %v2628 = vpop.f32.mrf.mxu0
    %v2629 = vadd.f32 %v2456, %v2628
    %2630 = vmatprep.mubr.f32.mxu0 0.0
    %v2631 = vand.u32 %v1787, 4294901760
    %2632 = vmatmul.mubr.f32.gmra.mxu0 %v2631
    %v2633 = vpop.f32.mrf.mxu0
    %v2634 = vadd.f32 %v2463, %v2633
    %v2635 = vpop.f32.mrf.mxu0
    %v2636 = vadd.f32 %v2465, %v2635
    %2637 = vmatprep.mubr.f32.mxu0 0.0
    %v2638 = vand.u32 %v1790, 4294901760
    %2639 = vmatmul.mubr.f32.gmra.mxu0 %v2638
    %v2640 = vpop.f32.mrf.mxu0
    %v2641 = vadd.f32 %v2472, %v2640
    %v2642 = vpop.f32.mrf.mxu0
    %v2643 = vadd.f32 %v2474, %v2642
    %2644 = vdwg.mxu0
    %2645 = vmatprep.subr.mxu0 0.0
    %2646 = vmatpush1.msra.mxu0 0.0
    %2647 = vmatprep.subr.mxu0 0.0
    %2648 = vmatpush1.msra.mxu0 0.0
    %2649 = vmatprep.subr.mxu0 0.0
    %2650 = vmatpush1.msra.mxu0 0.0
    %2651 = vmatprep.subr.mxu0 0.0
    %2652 = vmatpush1.msra.mxu0 0.0
    %2653 = vmatprep.subr.mxu0 0.0
    %2654 = vmatpush1.msra.mxu0 0.0
    %2655 = vmatprep.subr.mxu0 0.0
    %2656 = vmatpush1.msra.mxu0 0.0
    %2657 = vmatprep.subr.mxu0 0.0
    %2658 = vmatpush1.msra.mxu0 0.0
    %2659 = vmatprep.subr.mxu0 0.0
    %2660 = vmatpush1.msra.mxu0 0.0
    %v2661 = vand.u32 %v1754, 4294901760
    %2662 = vmatprep.subr.mxu0 %v2661
    %v2663 = vand.u32 %v1753, 4294901760
    %2664 = vmatpush1.msra.mxu0 %v2663
    %v2665 = vand.u32 %v1752, 4294901760
    %2666 = vmatprep.subr.mxu0 %v2665
    %v2667 = vand.u32 %v1751, 4294901760
    %2668 = vmatpush1.msra.mxu0 %v2667
    %v2669 = vand.u32 %v1750, 4294901760
    %2670 = vmatprep.subr.mxu0 %v2669
    %v2671 = vand.u32 %v1749, 4294901760
    %2672 = vmatpush1.msra.mxu0 %v2671
    %v2673 = vand.u32 %v1748, 4294901760
    %2674 = vmatprep.subr.mxu0 %v2673
    %v2675 = vand.u32 %v1747, 4294901760
    %2676 = vmatpush1.msra.mxu0 %v2675
    %v2677 = vand.u32 %v1746, 4294901760
    %2678 = vmatprep.subr.mxu0 %v2677
    %v2679 = vand.u32 %v1745, 4294901760
    %2680 = vmatpush1.msra.mxu0 %v2679
    %v2681 = vand.u32 %v1744, 4294901760
    %2682 = vmatprep.subr.mxu0 %v2681
    %v2683 = vand.u32 %v1743, 4294901760
    %2684 = vmatpush1.msra.mxu0 %v2683
    %v2685 = vand.u32 %v1742, 4294901760
    %2686 = vmatprep.subr.mxu0 %v2685
    %v2687 = vand.u32 %v1741, 4294901760
    %2688 = vmatpush1.msra.mxu0 %v2687
    %v2689 = vand.u32 %v1740, 4294901760
    %2690 = vmatprep.subr.mxu0 %v2689
    %v2691 = vand.u32 %v1739, 4294901760
    %2692 = vmatpush1.msra.mxu0 %v2691
    %2693 = vmatprep.subr.mxu0 0.0
    %2694 = vmatpush2.msra.mxu0 0.0
    %2695 = vmatprep.subr.mxu0 0.0
    %2696 = vmatpush2.msra.mxu0 0.0
    %2697 = vmatprep.subr.mxu0 0.0
    %2698 = vmatpush2.msra.mxu0 0.0
    %2699 = vmatprep.subr.mxu0 0.0
    %2700 = vmatpush2.msra.mxu0 0.0
    %2701 = vmatprep.subr.mxu0 0.0
    %2702 = vmatpush2.msra.mxu0 0.0
    %2703 = vmatprep.subr.mxu0 0.0
    %2704 = vmatpush2.msra.mxu0 0.0
    %2705 = vmatprep.subr.mxu0 0.0
    %2706 = vmatpush2.msra.mxu0 0.0
    %2707 = vmatprep.subr.mxu0 0.0
    %2708 = vmatpush2.msra.mxu0 0.0
    %2709 = vmatprep.subr.mxu0 0.0
    %2710 = vmatpush2.msra.mxu0 0.0
    %2711 = vmatprep.subr.mxu0 0.0
    %2712 = vmatpush2.msra.mxu0 0.0
    %2713 = vmatprep.subr.mxu0 0.0
    %2714 = vmatpush2.msra.mxu0 0.0
    %2715 = vmatprep.subr.mxu0 0.0
    %2716 = vmatpush2.msra.mxu0 0.0
    %2717 = vmatprep.subr.mxu0 0.0
    %2718 = vmatpush2.msra.mxu0 0.0
    %2719 = vmatprep.subr.mxu0 0.0
    %2720 = vmatpush2.msra.mxu0 0.0
    %2721 = vmatprep.subr.mxu0 0.0
    %2722 = vmatpush2.msra.mxu0 0.0
    %2723 = vmatprep.subr.mxu0 0.0
    %2724 = vmatpush2.msra.mxu0 0.0
    %2725 = vmatprep.mubr.f32.mxu0 0.0
    %v2726 = vand.u32 %v1769, 4294901760
    %2727 = vmatmul.mubr.f32.gmra.mxu0 %v2726
    %v2728 = vpop.f32.mrf.mxu0
    %v2729 = vadd.f32 %v2592, %v2728
    %v2730 = vpop.f32.mrf.mxu0
    %v2731 = vadd.f32 %v2594, %v2730
    %2732 = vmatprep.mubr.f32.mxu0 0.0
    %v2733 = vand.u32 %v1772, 4294901760
    %2734 = vmatmul.mubr.f32.gmra.mxu0 %v2733
    %v2735 = vpop.f32.mrf.mxu0
    %v2736 = vadd.f32 %v2599, %v2735
    %v2737 = vpop.f32.mrf.mxu0
    %v2738 = vadd.f32 %v2601, %v2737
    %2739 = vmatprep.mubr.f32.mxu0 0.0
    %v2740 = vand.u32 %v1775, 4294901760
    %2741 = vmatmul.mubr.f32.gmra.mxu0 %v2740
    %v2742 = vpop.f32.mrf.mxu0
    %v2743 = vadd.f32 %v2606, %v2742
    %v2744 = vpop.f32.mrf.mxu0
    %v2745 = vadd.f32 %v2608, %v2744
    %2746 = vmatprep.mubr.f32.mxu0 0.0
    %v2747 = vand.u32 %v1778, 4294901760
    %2748 = vmatmul.mubr.f32.gmra.mxu0 %v2747
    %v2749 = vpop.f32.mrf.mxu0
    %v2750 = vadd.f32 %v2613, %v2749
    %v2751 = vpop.f32.mrf.mxu0
    %v2752 = vadd.f32 %v2615, %v2751
    %2753 = vmatprep.mubr.f32.mxu0 0.0
    %v2754 = vand.u32 %v1781, 4294901760
    %2755 = vmatmul.mubr.f32.gmra.mxu0 %v2754
    %v2756 = vpop.f32.mrf.mxu0
    %v2757 = vadd.f32 %v2620, %v2756
    %v2758 = vpop.f32.mrf.mxu0
    %v2759 = vadd.f32 %v2622, %v2758
    %2760 = vmatprep.mubr.f32.mxu0 0.0
    %v2761 = vand.u32 %v1784, 4294901760
    %2762 = vmatmul.mubr.f32.gmra.mxu0 %v2761
    %v2763 = vpop.f32.mrf.mxu0
    %v2764 = vadd.f32 %v2627, %v2763
    %v2765 = vpop.f32.mrf.mxu0
    %v2766 = vadd.f32 %v2629, %v2765
    %2767 = vmatprep.mubr.f32.mxu0 0.0
    %v2768 = vand.u32 %v1787, 4294901760
    %2769 = vmatmul.mubr.f32.gmra.mxu0 %v2768
    %v2770 = vpop.f32.mrf.mxu0
    %v2771 = vadd.f32 %v2634, %v2770
    %v2772 = vpop.f32.mrf.mxu0
    %v2773 = vadd.f32 %v2636, %v2772
    %2774 = vmatprep.mubr.f32.mxu0 0.0
    %v2775 = vand.u32 %v1790, 4294901760
    %2776 = vmatmul.mubr.f32.gmra.mxu0 %v2775
    %v2777 = vpop.f32.mrf.mxu0
    %v2778 = vadd.f32 %v2641, %v2777
    %v2779 = vpop.f32.mrf.mxu0
    %v2780 = vadd.f32 %v2643, %v2779
    %2781 = vdwg.mxu0
    %v2782 = vtanh.pop %v2729
    %v2783 = vtanh.pop %v2731
    %v2784 = vtanh.pop %v2736
    %v2785 = vtanh.pop %v2738
    %v2786 = vtanh.pop %v2743
    %v2787 = vtanh.pop %v2745
    %v2788 = vtanh.pop %v2750
    %v2789 = vtanh.pop %v2752
    %v2790 = vtanh.pop %v2757
    %v2791 = vtanh.pop %v2759
    %v2792 = vtanh.pop %v2764
    %v2793 = vtanh.pop %v2766
    %v2794 = vtanh.pop %v2771
    %v2795 = vtanh.pop %v2773
    %v2796 = vtanh.pop %v2778
    %v2797 = vtanh.pop %v2780
    %2798 = vst [vmem:[%s7] sm:$0xff] %v2782
    %2799 = vst [vmem:[%s7 + $0x8] sm:$0xff] %v2783
    %2800 = vst [vmem:[%s7 + $0x10] sm:$0xff] %v2784
    %2801 = vst [vmem:[%s7 + $0x18] sm:$0xff] %v2785
    %2802 = vst [vmem:[%s7 + $0x20] sm:$0xff] %v2786
    %2803 = vst [vmem:[%s7 + $0x28] sm:$0xff] %v2787
    %2804 = vst [vmem:[%s7 + $0x30] sm:$0xff] %v2788
    %2805 = vst [vmem:[%s7 + $0x38] sm:$0xff] %v2789
    %2806 = vst [vmem:[%s7 + $0x40] sm:$0xff] %v2790
    %2807 = vst [vmem:[%s7 + $0x48] sm:$0xff] %v2791
    %2808 = vst [vmem:[%s7 + $0x50] sm:$0xff] %v2792
    %2809 = vst [vmem:[%s7 + $0x58] sm:$0xff] %v2793
    %2810 = vst [vmem:[%s7 + $0x60] sm:$0xff] %v2794
    %2811 = vst [vmem:[%s7 + $0x68] sm:$0xff] %v2795
    %2812 = vst [vmem:[%s7 + $0x70] sm:$0xff] %v2796
    %2813 = vst [vmem:[%s7 + $0x78] sm:$0xff] %v2797
    // Predicated region
    $region50: #{cgtn_generate_all.1} parent=1 // pred_check
      _
    $region51: #{cgtn_generate_all.1} parent=1 // pred_check_branch
      %2815 = sbr.rel (0) target = $region53
    $region52: #{cgtn_generate_all.1} parent=1 // pred_region
      _
    $region53: #{cgtn_generate_all.1} parent=1 // pred_fallthru
      _
    // Predicated region
    $region54: #{cgtn_generate_all.1} parent=1 // pred_check
      _
    $region55: #{cgtn_generate_all.1} parent=1 // pred_check_branch
      %2817 = sbr.rel (0) target = $region57
    $region56: #{cgtn_generate_all.1} parent=1 // pred_region
      _
    $region57: #{cgtn_generate_all.1} parent=1 // pred_fallthru
      _
    %2818 = vsyncpa [#allocation3], 1
    %2819 = vsyncpa [#allocation5], 1
    %2820 = vsyncpa [#allocation8], 1

</llo_original>
